<compile_context>
chip_gen: v6e
topology: v6e:2x2x1
jax: 0.10.0
libtpu: 0.0.40
codegen_flags: <defaults>
</compile_context>

<pallas_src>
import functools

import jax
import jax.numpy as jnp
from jax.experimental import pallas as pl
from jax.experimental.pallas import tpu as pltpu


# -----------------------------------------------------------------------------
# Pallas kernel: fused 3-layer MLP head
# -----------------------------------------------------------------------------
def _mlp_kernel(x_ref, w1_ref, b1_ref, w2_ref, b2_ref, w3_ref, b3_ref, o_ref,
                *, neg_slope):
    """Fused Linear->LReLU->Linear->LReLU->Linear->Sigmoid for one batch tile.

    x_ref  : (TM, D)      bf16 flattened input tile
    w1_ref : (D, H1)      bf16
    b1_ref : (1, H1)      f32
    w2_ref : (H1, H2)     bf16
    b2_ref : (1, H2)      f32
    w3_ref : (H2, NP)     bf16  (true out-dim 1, zero-padded to NP=128 lanes)
    b3_ref : (1, NP)      f32   (zero-padded)
    o_ref  : (TM, NP)     f32   sigmoid output (only column 0 is meaningful)
    """
    x = x_ref[...]
    h = jnp.dot(x, w1_ref[...], preferred_element_type=jnp.float32) + b1_ref[...]
    h = jnp.where(h > 0, h, neg_slope * h).astype(jnp.bfloat16)
    h = jnp.dot(h, w2_ref[...], preferred_element_type=jnp.float32) + b2_ref[...]
    h = jnp.where(h > 0, h, neg_slope * h).astype(jnp.bfloat16)
    logits = jnp.dot(h, w3_ref[...], preferred_element_type=jnp.float32) + b3_ref[...]
    o_ref[...] = jax.nn.sigmoid(logits)


# -----------------------------------------------------------------------------
# Wrapper
# -----------------------------------------------------------------------------
def linear_discriminator_forward(params, img):
    """img: (B, ...) any trailing shape; flattened like img.view(B, -1)."""
    B = img.shape[0]
    x = img.reshape(B, -1).astype(jnp.bfloat16)
    D = x.shape[1]
    H1 = params["w1"].shape[1]
    H2 = params["w2"].shape[1]
    NP = params["w3p"].shape[1]          # lane-padded final width (128)

    # Batch tiling: single full-batch block for small B; for large B tile the
    # batch on a "parallel" grid axis (keeps both v7x TensorCores busy).
    tm = B
    for cand in (512, 256, 128):
        if B % cand == 0:
            tm = cand
            break
    grid = (B // tm,)

    kern = functools.partial(_mlp_kernel, neg_slope=0.2)
    out_padded = pl.pallas_call(
        kern,
        out_shape=jax.ShapeDtypeStruct((B, NP), jnp.float32),
        grid=grid,
        in_specs=[
            pl.BlockSpec((tm, D), lambda i: (i, 0)),
            pl.BlockSpec((D, H1), lambda i: (0, 0)),
            pl.BlockSpec((1, H1), lambda i: (0, 0)),
            pl.BlockSpec((H1, H2), lambda i: (0, 0)),
            pl.BlockSpec((1, H2), lambda i: (0, 0)),
            pl.BlockSpec((H2, NP), lambda i: (0, 0)),
            pl.BlockSpec((1, NP), lambda i: (0, 0)),
        ],
        out_specs=pl.BlockSpec((tm, NP), lambda i: (i, 0)),
        compiler_params=pltpu.CompilerParams(dimension_semantics=("parallel",)),
    )(x, params["w1"], params["b1"], params["w2"], params["b2"],
      params["w3p"], params["b3p"])

    return out_padded[:, :1]             # slice off the lane padding -> (B, 1)


def pack_params(w_f32, lane_pad=128):
    """Convert f32 (in, out)-layout weights into the kernel's layout:
    bf16 matmul operands, f32 biases, final layer zero-padded to `lane_pad`."""
    H2 = w_f32["w3"].shape[0]
    w3p = jnp.zeros((H2, lane_pad), jnp.float32).at[:, :1].set(w_f32["w3"])
    b3p = jnp.zeros((1, lane_pad), jnp.float32).at[:, :1].set(w_f32["b3"])
    return {
        "w1": w_f32["w1"].astype(jnp.bfloat16),
        "b1": w_f32["b1"].astype(jnp.float32),
        "w2": w_f32["w2"].astype(jnp.bfloat16),
        "b2": w_f32["b2"].astype(jnp.float32),
        "w3p": w3p.astype(jnp.bfloat16),
        "b3p": b3p,
    }


# -----------------------------------------------------------------------------
# Pure-JAX f32 reference (numerical check)
# -----------------------------------------------------------------------------
def ref_forward(w, img):
    x = img.reshape(img.shape[0], -1).astype(jnp.float32)
    h = x @ w["w1"] + w["b1"]
    h = jnp.where(h > 0, h, 0.2 * h)
    h = h @ w["w2"] + w["b2"]
    h = jnp.where(h > 0, h, 0.2 * h)
    return jax.nn.sigmoid(h @ w["w3"] + w["b3"])


# -----------------------------------------------------------------------------
# Main
# -----------------------------------------------------------------------------
if __name__ == "__main__":
    key = jax.random.PRNGKey(0)
    ks = jax.random.split(key, 8)

    B, C, H, W = 2, 4, 16, 16
    D = C * H * W                      # input_size = 1024
    H1, H2 = 512, 256

    def winit(k, shape, fan_in):
        return jax.random.normal(k, shape, jnp.float32) / jnp.sqrt(fan_in)

    # Weights stored in (in, out) orientation (transpose of torch's Linear).
    w_f32 = {
        "w1": winit(ks[0], (D, H1), D),   "b1": 0.1 * jax.random.normal(ks[1], (1, H1), jnp.float32),
        "w2": winit(ks[2], (H1, H2), H1), "b2": 0.1 * jax.random.normal(ks[3], (1, H2), jnp.float32),
        "w3": winit(ks[4], (H2, 1), H2),  "b3": 0.1 * jax.random.normal(ks[5], (1, 1), jnp.float32),
    }
    params = pack_params(w_f32)

    img = jax.random.normal(ks[6], (B, C, H, W), jnp.float32)

    out = linear_discriminator_forward(params, img)
    out = jax.block_until_ready(out)

    ref = ref_forward(w_f32, img)
    assert out.shape == (B, 1), out.shape
    assert jnp.allclose(out, ref, atol=1e-2, rtol=1e-2), (out, ref)

    print("KERNEL_OK")
</pallas_src>

<mosaic_0001>
module attributes {stable_mosaic.version = 11 : i64} {
  func.func @_mlp_kernel(%arg0: i32, %arg1: memref<2x1024xbf16, #tpu.memory_space<vmem>>, %arg2: memref<1024x512xbf16, #tpu.memory_space<vmem>>, %arg3: memref<1x512xf32, #tpu.memory_space<vmem>>, %arg4: memref<512x256xbf16, #tpu.memory_space<vmem>>, %arg5: memref<1x256xf32, #tpu.memory_space<vmem>>, %arg6: memref<256x128xbf16, #tpu.memory_space<vmem>>, %arg7: memref<1x128xf32, #tpu.memory_space<vmem>>, %arg8: memref<2x128xf32, #tpu.memory_space<vmem>>) attributes {dimension_semantics = [#tpu.dimension_semantics<parallel>], iteration_bounds = array<i64: 1>, scalar_prefetch = 0 : i64, scratch_operands = 0 : i64, tpu.core_type = #tpu.core_type<tc>, window_params = [{transform_indices = @transform_0, window_bounds = array<i64: 2, 1024>}, {pipeline_mode = #tpu.pipeline_mode<synchronous>, transform_indices = @transform_1, window_bounds = array<i64: 1024, 512>}, {pipeline_mode = #tpu.pipeline_mode<synchronous>, transform_indices = @transform_2, window_bounds = array<i64: 1, 512>}, {pipeline_mode = #tpu.pipeline_mode<synchronous>, transform_indices = @transform_3, window_bounds = array<i64: 512, 256>}, {pipeline_mode = #tpu.pipeline_mode<synchronous>, transform_indices = @transform_4, window_bounds = array<i64: 1, 256>}, {pipeline_mode = #tpu.pipeline_mode<synchronous>, transform_indices = @transform_5, window_bounds = array<i64: 256, 128>}, {pipeline_mode = #tpu.pipeline_mode<synchronous>, transform_indices = @transform_6, window_bounds = array<i64: 1, 128>}, {transform_indices = @transform_7, window_bounds = array<i64: 2, 128>}]} {
    %c0 = arith.constant 0 : index
    %c0_0 = arith.constant 0 : index
    %0 = vector.load %arg1[%c0, %c0_0] : memref<2x1024xbf16, #tpu.memory_space<vmem>>, vector<2x1024xbf16>
    %c0_1 = arith.constant 0 : index
    %c0_2 = arith.constant 0 : index
    %1 = vector.load %arg2[%c0_1, %c0_2] : memref<1024x512xbf16, #tpu.memory_space<vmem>>, vector<1024x512xbf16>
    %cst = arith.constant dense<0.000000e+00> : vector<2x512xf32>
    %2 = tpu.matmul %0, %1, %cst {dimension_numbers = #tpu.dot_dimension_numbers<[1], [0], [0], [1], [0, 0, 1, 1], [], []>} : vector<2x1024xbf16>, vector<1024x512xbf16>, vector<2x512xf32> -> vector<2x512xf32>
    %c0_3 = arith.constant 0 : index
    %c0_4 = arith.constant 0 : index
    %3 = vector.load %arg3[%c0_3, %c0_4] : memref<1x512xf32, #tpu.memory_space<vmem>>, vector<1x512xf32>
    %4 = vector.broadcast %3 : vector<1x512xf32> to vector<2x512xf32>
    %5 = arith.addf %2, %4 : vector<2x512xf32>
    %cst_5 = arith.constant 0.000000e+00 : f32
    %6 = vector.broadcast %cst_5 : f32 to vector<2x512xf32>
    %7 = arith.cmpf ogt, %5, %6 : vector<2x512xf32>
    %cst_6 = arith.constant 2.000000e-01 : f32
    %8 = vector.broadcast %cst_6 : f32 to vector<2x512xf32>
    %9 = arith.mulf %8, %5 : vector<2x512xf32>
    %10 = arith.select %7, %5, %9 : vector<2x512xi1>, vector<2x512xf32>
    %11 = arith.truncf %10 : vector<2x512xf32> to vector<2x512xbf16>
    %c0_7 = arith.constant 0 : index
    %c0_8 = arith.constant 0 : index
    %12 = vector.load %arg4[%c0_7, %c0_8] : memref<512x256xbf16, #tpu.memory_space<vmem>>, vector<512x256xbf16>
    %cst_9 = arith.constant dense<0.000000e+00> : vector<2x256xf32>
    %13 = tpu.matmul %11, %12, %cst_9 {dimension_numbers = #tpu.dot_dimension_numbers<[1], [0], [0], [1], [0, 0, 1, 1], [], []>} : vector<2x512xbf16>, vector<512x256xbf16>, vector<2x256xf32> -> vector<2x256xf32>
    %c0_10 = arith.constant 0 : index
    %c0_11 = arith.constant 0 : index
    %14 = vector.load %arg5[%c0_10, %c0_11] : memref<1x256xf32, #tpu.memory_space<vmem>>, vector<1x256xf32>
    %15 = vector.broadcast %14 : vector<1x256xf32> to vector<2x256xf32>
    %16 = arith.addf %13, %15 : vector<2x256xf32>
    %cst_12 = arith.constant 0.000000e+00 : f32
    %17 = vector.broadcast %cst_12 : f32 to vector<2x256xf32>
    %18 = arith.cmpf ogt, %16, %17 : vector<2x256xf32>
    %cst_13 = arith.constant 2.000000e-01 : f32
    %19 = vector.broadcast %cst_13 : f32 to vector<2x256xf32>
    %20 = arith.mulf %19, %16 : vector<2x256xf32>
    %21 = arith.select %18, %16, %20 : vector<2x256xi1>, vector<2x256xf32>
    %22 = arith.truncf %21 : vector<2x256xf32> to vector<2x256xbf16>
    %c0_14 = arith.constant 0 : index
    %c0_15 = arith.constant 0 : index
    %23 = vector.load %arg6[%c0_14, %c0_15] : memref<256x128xbf16, #tpu.memory_space<vmem>>, vector<256x128xbf16>
    %cst_16 = arith.constant dense<0.000000e+00> : vector<2x128xf32>
    %24 = tpu.matmul %22, %23, %cst_16 {dimension_numbers = #tpu.dot_dimension_numbers<[1], [0], [0], [1], [0, 0, 1, 1], [], []>} : vector<2x256xbf16>, vector<256x128xbf16>, vector<2x128xf32> -> vector<2x128xf32>
    %c0_17 = arith.constant 0 : index
    %c0_18 = arith.constant 0 : index
    %25 = vector.load %arg7[%c0_17, %c0_18] : memref<1x128xf32, #tpu.memory_space<vmem>>, vector<1x128xf32>
    %26 = vector.broadcast %25 : vector<1x128xf32> to vector<2x128xf32>
    %27 = arith.addf %24, %26 : vector<2x128xf32>
    %28 = arith.negf %27 : vector<2x128xf32>
    %29 = math.exp %28 : vector<2x128xf32>
    %cst_19 = arith.constant 1.000000e+00 : f32
    %30 = vector.broadcast %cst_19 : f32 to vector<2x128xf32>
    %31 = arith.addf %30, %29 : vector<2x128xf32>
    %32 = arith.divf %30, %31 : vector<2x128xf32>
    %c0_20 = arith.constant 0 : index
    %c0_21 = arith.constant 0 : index
    %33 = vector.load %arg8[%c0_20, %c0_21] : memref<2x128xf32, #tpu.memory_space<vmem>>, vector<2x128xf32>
    tpu.vector_store %arg8[%c0_20, %c0_21], %32 {strides = array<i32>} : memref<2x128xf32, #tpu.memory_space<vmem>>, vector<2x128xf32>,
    return
  }
  func.func @transform_0(%arg0: i32) -> (i32, i32) {
    %c0_i32 = arith.constant 0 : i32
    %c0_i32_0 = arith.constant 0 : i32
    return %arg0, %c0_i32 : i32, i32
  }
  func.func @transform_1(%arg0: i32) -> (i32, i32) {
    %c0_i32 = arith.constant 0 : i32
    %c0_i32_0 = arith.constant 0 : i32
    %c0_i32_1 = arith.constant 0 : i32
    return %c0_i32, %c0_i32_0 : i32, i32
  }
  func.func @transform_2(%arg0: i32) -> (i32, i32) {
    %c0_i32 = arith.constant 0 : i32
    %c0_i32_0 = arith.constant 0 : i32
    %c0_i32_1 = arith.constant 0 : i32
    return %c0_i32, %c0_i32_0 : i32, i32
  }
  func.func @transform_3(%arg0: i32) -> (i32, i32) {
    %c0_i32 = arith.constant 0 : i32
    %c0_i32_0 = arith.constant 0 : i32
    %c0_i32_1 = arith.constant 0 : i32
    return %c0_i32, %c0_i32_0 : i32, i32
  }
  func.func @transform_4(%arg0: i32) -> (i32, i32) {
    %c0_i32 = arith.constant 0 : i32
    %c0_i32_0 = arith.constant 0 : i32
    %c0_i32_1 = arith.constant 0 : i32
    return %c0_i32, %c0_i32_0 : i32, i32
  }
  func.func @transform_5(%arg0: i32) -> (i32, i32) {
    %c0_i32 = arith.constant 0 : i32
    %c0_i32_0 = arith.constant 0 : i32
    %c0_i32_1 = arith.constant 0 : i32
    return %c0_i32, %c0_i32_0 : i32, i32
  }
  func.func @transform_6(%arg0: i32) -> (i32, i32) {
    %c0_i32 = arith.constant 0 : i32
    %c0_i32_0 = arith.constant 0 : i32
    %c0_i32_1 = arith.constant 0 : i32
    return %c0_i32, %c0_i32_0 : i32, i32
  }
  func.func @transform_7(%arg0: i32) -> (i32, i32) {
    %c0_i32 = arith.constant 0 : i32
    %c0_i32_0 = arith.constant 0 : i32
    return %arg0, %c0_i32 : i32, i32
  }
}

</mosaic_0001>

<llo_original>
// kernel: tpu_custom_call.1
$region0: #{tpu_custom_call.1}
  #allocation0 [shape = 'u32[]', space=smem, size = 0x4, offset = 0x4, fixed_abs, tag = 'smem constant byte address 0x4 - core index']
  #allocation1 [shape = 'u32[144,128]{1,0:T(1,128)}', space=vmem, size = 0x12000, scoped, tag = 'internal scratch']
  %s0 = inlined_call_operand.hbm [shape: bf16[2,1024], index: 0, kind: input, shape index: {}]
  %s1 = inlined_call_operand.hbm [shape: bf16[1024,512], index: 1, kind: input, shape index: {}]
  %s2 = inlined_call_operand.hbm [shape: f32[1,512], index: 2, kind: input, shape index: {}]
  %s3 = inlined_call_operand.hbm [shape: bf16[512,256], index: 3, kind: input, shape index: {}]
  %s4 = inlined_call_operand.vmem [shape: f32[1,256], index: 4, kind: input, shape index: {}]
  %s5 = inlined_call_operand.hbm [shape: bf16[256,128], index: 5, kind: input, shape index: {}]
  %s6 = inlined_call_operand.vmem [shape: f32[1,128], index: 6, kind: input, shape index: {}]
  %s7 = inlined_call_operand.hbm [shape: f32[2,128], index: 7, kind: output, shape index: {}]
  %s8 = sld [smem:[#allocation0]]
  $region58: #{tpu_custom_call.1} parent=0
    _
  %s10 = ssub.s32 1, %s8
  %s11 = scalar_select 0, %s10, %s8
  $region1: #{tpu_custom_call.1} parent=0
    #allocation2 [shape = 'u8[4096]{0}', space=vmem, size = 0x1000, scoped, tag = 'input window, operand 0, single buffered']
    #allocation3 [shape = 's32[1]{0}', space=sflag, size = 0x4, scoped, tag = 'scoped memory for tpu_custom_call.1']
    #allocation4 [shape = 's32[1]{0}', space=sflag, size = 0x4, scoped, tag = 'scoped memory for tpu_custom_call.1']
    #allocation5 [shape = 'u8[1048576]{0}', space=vmem, size = 0x100000, scoped, tag = 'input window, operand 1, single buffered']
    #allocation6 [shape = 's32[1]{0}', space=sflag, size = 0x4, scoped, tag = 'scoped memory for tpu_custom_call.1']
    #allocation7 [shape = 'u8[2048]{0}', space=vmem, size = 0x800, scoped, tag = 'input window, operand 2, single buffered']
    #allocation8 [shape = 'u8[262144]{0}', space=vmem, size = 0x40000, scoped, tag = 'input window, operand 3, single buffered']
    #allocation9 [shape = 's32[1]{0}', space=sflag, size = 0x4, scoped, tag = 'scoped memory for tpu_custom_call.1']
    #allocation10 [shape = 'u8[65536]{0}', space=vmem, size = 0x10000, scoped, tag = 'input window, operand 5, single buffered']
    #allocation11 [shape = 'u8[1024]{0}', space=vmem, size = 0x400, scoped, tag = 'output window, operand 0, single buffered']
    %12 = vsyncpa [#allocation3], 0
    %13 = vsyncpa [#allocation6], 0
    %14 = vsyncpa [#allocation9], 0
    %15 = vsyncpa [#allocation4], 0
    // Predicated region
    $region2: #{tpu_custom_call.1} parent=1 // pred_check
      _
    $region3: #{tpu_custom_call.1} parent=1 // pred_check_branch
      %17 = sbr.rel (0) target = $region5
    $region4: #{tpu_custom_call.1} parent=1 // pred_region
      %s19 = ssub.s32 128, 128
      %20 = vsyncadd [#allocation3], %s19
      %s22 = sshll.u32 [#allocation2], 4
      %s23 = int_to_ptr.vmem [resolvable:$true] %s22
      %25 = dma.hbm_to_vmem [thread:$0]  %s0, 128, %s23, [#allocation3]
    $region5: #{tpu_custom_call.1} parent=1 // pred_fallthru
      _
    // Predicated region
    $region6: #{tpu_custom_call.1} parent=1 // pred_check
      _
    $region7: #{tpu_custom_call.1} parent=1 // pred_check_branch
      %27 = sbr.rel (0) target = $region9
    $region8: #{tpu_custom_call.1} parent=1 // pred_region
      %s29 = ssub.s32 32768, 32768
      %30 = vsyncadd [#allocation6], %s29
      %s31 = sshll.u32 [#allocation5], 4
      %s32 = int_to_ptr.vmem [resolvable:$true] %s31
      %37 = dma.hbm_to_vmem [thread:$0]  %s1, 32768, %s32, [#allocation6], 256, 256, 16
    $region9: #{tpu_custom_call.1} parent=1 // pred_fallthru
      _
    // Predicated region
    $region10: #{tpu_custom_call.1} parent=1 // pred_check
      _
    $region11: #{tpu_custom_call.1} parent=1 // pred_check_branch
      %39 = sbr.rel (0) target = $region13
    $region12: #{tpu_custom_call.1} parent=1 // pred_region
      %s41 = ssub.s32 64, 64
      %42 = vsyncadd [#allocation6], %s41
      %s44 = sshll.u32 [#allocation7], 4
      %s45 = int_to_ptr.vmem [resolvable:$true] %s44
      %47 = dma.hbm_to_vmem [thread:$0]  %s2, 64, %s45, [#allocation6]
    $region13: #{tpu_custom_call.1} parent=1 // pred_fallthru
      _
    // Predicated region
    $region14: #{tpu_custom_call.1} parent=1 // pred_check
      _
    $region15: #{tpu_custom_call.1} parent=1 // pred_check_branch
      %49 = sbr.rel (0) target = $region17
    $region16: #{tpu_custom_call.1} parent=1 // pred_region
      %s51 = ssub.s32 8192, 8192
      %52 = vsyncadd [#allocation9], %s51
      %s53 = sshll.u32 [#allocation8], 4
      %s54 = int_to_ptr.vmem [resolvable:$true] %s53
      %59 = dma.hbm_to_vmem [thread:$0]  %s3, 8192, %s54, [#allocation9], 128, 128, 8
    $region17: #{tpu_custom_call.1} parent=1 // pred_fallthru
      _
    // Predicated region
    $region18: #{tpu_custom_call.1} parent=1 // pred_check
      _
    $region19: #{tpu_custom_call.1} parent=1 // pred_check_branch
      %61 = sbr.rel (0) target = $region21
    $region20: #{tpu_custom_call.1} parent=1 // pred_region
      _
    $region21: #{tpu_custom_call.1} parent=1 // pred_fallthru
      _
    // Predicated region
    $region22: #{tpu_custom_call.1} parent=1 // pred_check
      _
    $region23: #{tpu_custom_call.1} parent=1 // pred_check_branch
      %63 = sbr.rel (0) target = $region25
    $region24: #{tpu_custom_call.1} parent=1 // pred_region
      %s65 = ssub.s32 2048, 2048
      %66 = vsyncadd [#allocation9], %s65
      %s67 = sshll.u32 [#allocation10], 4
      %s68 = int_to_ptr.vmem [resolvable:$true] %s67
      %73 = dma.hbm_to_vmem [thread:$0]  %s5, 2048, %s68, [#allocation9], 64, 64, 4
    $region25: #{tpu_custom_call.1} parent=1 // pred_fallthru
      _
    // Predicated region
    $region26: #{tpu_custom_call.1} parent=1 // pred_check
      _
    $region27: #{tpu_custom_call.1} parent=1 // pred_check_branch
      %75 = sbr.rel (0) target = $region29
    $region28: #{tpu_custom_call.1} parent=1 // pred_region
      _
    $region29: #{tpu_custom_call.1} parent=1 // pred_fallthru
      _
    // Predicated region
    $region30: #{tpu_custom_call.1} parent=1 // pred_check
      _
    $region31: #{tpu_custom_call.1} parent=1 // pred_check_branch
      %77 = sbr.rel (0) target = $region33
    $region32: #{tpu_custom_call.1} parent=1 // pred_region
      %78 = dma.done [#allocation3], 128
    $region33: #{tpu_custom_call.1} parent=1 // pred_fallthru
      _
    // Predicated region
    $region34: #{tpu_custom_call.1} parent=1 // pred_check
      _
    $region35: #{tpu_custom_call.1} parent=1 // pred_check_branch
      %80 = sbr.rel (0) target = $region37
    $region36: #{tpu_custom_call.1} parent=1 // pred_region
      %81 = dma.done [#allocation6], 32768
    $region37: #{tpu_custom_call.1} parent=1 // pred_fallthru
      _
    // Predicated region
    $region38: #{tpu_custom_call.1} parent=1 // pred_check
      _
    $region39: #{tpu_custom_call.1} parent=1 // pred_check_branch
      %83 = sbr.rel (0) target = $region41
    $region40: #{tpu_custom_call.1} parent=1 // pred_region
      %84 = dma.done [#allocation6], 64
    $region41: #{tpu_custom_call.1} parent=1 // pred_fallthru
      _
    // Predicated region
    $region42: #{tpu_custom_call.1} parent=1 // pred_check
      _
    $region43: #{tpu_custom_call.1} parent=1 // pred_check_branch
      %86 = sbr.rel (0) target = $region45
    $region44: #{tpu_custom_call.1} parent=1 // pred_region
      %87 = dma.done [#allocation9], 8192
    $region45: #{tpu_custom_call.1} parent=1 // pred_fallthru
      _
    // Predicated region
    $region46: #{tpu_custom_call.1} parent=1 // pred_check
      _
    $region47: #{tpu_custom_call.1} parent=1 // pred_check_branch
      %89 = sbr.rel (0) target = $region49
    $region48: #{tpu_custom_call.1} parent=1 // pred_region
      %90 = dma.done [#allocation9], 2048
    $region49: #{tpu_custom_call.1} parent=1 // pred_fallthru
      _
    %v92 = vld [vmem:[#allocation2] sm:$0xff]
    %v93 = vld [vmem:[#allocation5] sm:$0xff]
    %v94 = vld [vmem:[#allocation5 + $0x8] sm:$0xff]
    %v95 = vld [vmem:[#allocation5 + $0x10] sm:$0xff]
    %v96 = vld [vmem:[#allocation5 + $0x18] sm:$0xff]
    %v97 = vld [vmem:[#allocation5 + $0x20] sm:$0xff]
    %v98 = vld [vmem:[#allocation5 + $0x28] sm:$0xff]
    %v99 = vld [vmem:[#allocation5 + $0x30] sm:$0xff]
    %v100 = vld [vmem:[#allocation5 + $0x38] sm:$0xff]
    %v101 = vld [vmem:[#allocation5 + $0x40] sm:$0xff]
    %v102 = vld [vmem:[#allocation5 + $0x48] sm:$0xff]
    %v103 = vld [vmem:[#allocation5 + $0x50] sm:$0xff]
    %v104 = vld [vmem:[#allocation5 + $0x58] sm:$0xff]
    %v105 = vld [vmem:[#allocation5 + $0x60] sm:$0xff]
    %v106 = vld [vmem:[#allocation5 + $0x68] sm:$0xff]
    %v107 = vld [vmem:[#allocation5 + $0x70] sm:$0xff]
    %v108 = vld [vmem:[#allocation5 + $0x78] sm:$0xff]
    %v109 = vld [vmem:[#allocation5 + $0x80] sm:$0xff]
    %v110 = vld [vmem:[#allocation5 + $0x88] sm:$0xff]
    %v111 = vld [vmem:[#allocation5 + $0x90] sm:$0xff]
    %v112 = vld [vmem:[#allocation5 + $0x98] sm:$0xff]
    %v113 = vld [vmem:[#allocation5 + $0xa0] sm:$0xff]
    %v114 = vld [vmem:[#allocation5 + $0xa8] sm:$0xff]
    %v115 = vld [vmem:[#allocation5 + $0xb0] sm:$0xff]
    %v116 = vld [vmem:[#allocation5 + $0xb8] sm:$0xff]
    %v117 = vld [vmem:[#allocation5 + $0xc0] sm:$0xff]
    %v118 = vld [vmem:[#allocation5 + $0xc8] sm:$0xff]
    %v119 = vld [vmem:[#allocation5 + $0xd0] sm:$0xff]
    %v120 = vld [vmem:[#allocation5 + $0xd8] sm:$0xff]
    %v121 = vld [vmem:[#allocation5 + $0xe0] sm:$0xff]
    %v122 = vld [vmem:[#allocation5 + $0xe8] sm:$0xff]
    %v123 = vld [vmem:[#allocation5 + $0xf0] sm:$0xff]
    %v124 = vld [vmem:[#allocation5 + $0xf8] sm:$0xff]
    %v125 = vld [vmem:[#allocation5 + $0x100] sm:$0xff]
    %v126 = vld [vmem:[#allocation5 + $0x108] sm:$0xff]
    %v127 = vld [vmem:[#allocation5 + $0x110] sm:$0xff]
    %v128 = vld [vmem:[#allocation5 + $0x118] sm:$0xff]
    %v129 = vld [vmem:[#allocation5 + $0x120] sm:$0xff]
    %v130 = vld [vmem:[#allocation5 + $0x128] sm:$0xff]
    %v131 = vld [vmem:[#allocation5 + $0x130] sm:$0xff]
    %v132 = vld [vmem:[#allocation5 + $0x138] sm:$0xff]
    %v133 = vld [vmem:[#allocation5 + $0x140] sm:$0xff]
    %v134 = vld [vmem:[#allocation5 + $0x148] sm:$0xff]
    %v135 = vld [vmem:[#allocation5 + $0x150] sm:$0xff]
    %v136 = vld [vmem:[#allocation5 + $0x158] sm:$0xff]
    %v137 = vld [vmem:[#allocation5 + $0x160] sm:$0xff]
    %v138 = vld [vmem:[#allocation5 + $0x168] sm:$0xff]
    %v139 = vld [vmem:[#allocation5 + $0x170] sm:$0xff]
    %v140 = vld [vmem:[#allocation5 + $0x178] sm:$0xff]
    %v141 = vld [vmem:[#allocation5 + $0x180] sm:$0xff]
    %v142 = vld [vmem:[#allocation5 + $0x188] sm:$0xff]
    %v143 = vld [vmem:[#allocation5 + $0x190] sm:$0xff]
    %v144 = vld [vmem:[#allocation5 + $0x198] sm:$0xff]
    %v145 = vld [vmem:[#allocation5 + $0x1a0] sm:$0xff]
    %v146 = vld [vmem:[#allocation5 + $0x1a8] sm:$0xff]
    %v147 = vld [vmem:[#allocation5 + $0x1b0] sm:$0xff]
    %v148 = vld [vmem:[#allocation5 + $0x1b8] sm:$0xff]
    %v149 = vld [vmem:[#allocation5 + $0x1c0] sm:$0xff]
    %v150 = vld [vmem:[#allocation5 + $0x1c8] sm:$0xff]
    %v151 = vld [vmem:[#allocation5 + $0x1d0] sm:$0xff]
    %v152 = vld [vmem:[#allocation5 + $0x1d8] sm:$0xff]
    %v153 = vld [vmem:[#allocation5 + $0x1e0] sm:$0xff]
    %v154 = vld [vmem:[#allocation5 + $0x1e8] sm:$0xff]
    %v155 = vld [vmem:[#allocation5 + $0x1f0] sm:$0xff]
    %v156 = vld [vmem:[#allocation5 + $0x1f8] sm:$0xff]
    %v157 = vld [vmem:[#allocation5 + $0x200] sm:$0xff]
    %v158 = vld [vmem:[#allocation5 + $0x208] sm:$0xff]
    %v159 = vld [vmem:[#allocation5 + $0x210] sm:$0xff]
    %v160 = vld [vmem:[#allocation5 + $0x218] sm:$0xff]
    %v161 = vld [vmem:[#allocation5 + $0x220] sm:$0xff]
    %v162 = vld [vmem:[#allocation5 + $0x228] sm:$0xff]
    %v163 = vld [vmem:[#allocation5 + $0x230] sm:$0xff]
    %v164 = vld [vmem:[#allocation5 + $0x238] sm:$0xff]
    %v165 = vld [vmem:[#allocation5 + $0x240] sm:$0xff]
    %v166 = vld [vmem:[#allocation5 + $0x248] sm:$0xff]
    %v167 = vld [vmem:[#allocation5 + $0x250] sm:$0xff]
    %v168 = vld [vmem:[#allocation5 + $0x258] sm:$0xff]
    %v169 = vld [vmem:[#allocation5 + $0x260] sm:$0xff]
    %v170 = vld [vmem:[#allocation5 + $0x268] sm:$0xff]
    %v171 = vld [vmem:[#allocation5 + $0x270] sm:$0xff]
    %v172 = vld [vmem:[#allocation5 + $0x278] sm:$0xff]
    %v173 = vld [vmem:[#allocation5 + $0x280] sm:$0xff]
    %v174 = vld [vmem:[#allocation5 + $0x288] sm:$0xff]
    %v175 = vld [vmem:[#allocation5 + $0x290] sm:$0xff]
    %v176 = vld [vmem:[#allocation5 + $0x298] sm:$0xff]
    %v177 = vld [vmem:[#allocation5 + $0x2a0] sm:$0xff]
    %v178 = vld [vmem:[#allocation5 + $0x2a8] sm:$0xff]
    %v179 = vld [vmem:[#allocation5 + $0x2b0] sm:$0xff]
    %v180 = vld [vmem:[#allocation5 + $0x2b8] sm:$0xff]
    %v181 = vld [vmem:[#allocation5 + $0x2c0] sm:$0xff]
    %v182 = vld [vmem:[#allocation5 + $0x2c8] sm:$0xff]
    %v183 = vld [vmem:[#allocation5 + $0x2d0] sm:$0xff]
    %v184 = vld [vmem:[#allocation5 + $0x2d8] sm:$0xff]
    %v185 = vld [vmem:[#allocation5 + $0x2e0] sm:$0xff]
    %v186 = vld [vmem:[#allocation5 + $0x2e8] sm:$0xff]
    %v187 = vld [vmem:[#allocation5 + $0x2f0] sm:$0xff]
    %v188 = vld [vmem:[#allocation5 + $0x2f8] sm:$0xff]
    %v189 = vld [vmem:[#allocation5 + $0x300] sm:$0xff]
    %v190 = vld [vmem:[#allocation5 + $0x308] sm:$0xff]
    %v191 = vld [vmem:[#allocation5 + $0x310] sm:$0xff]
    %v192 = vld [vmem:[#allocation5 + $0x318] sm:$0xff]
    %v193 = vld [vmem:[#allocation5 + $0x320] sm:$0xff]
    %v194 = vld [vmem:[#allocation5 + $0x328] sm:$0xff]
    %v195 = vld [vmem:[#allocation5 + $0x330] sm:$0xff]
    %v196 = vld [vmem:[#allocation5 + $0x338] sm:$0xff]
    %v197 = vld [vmem:[#allocation5 + $0x340] sm:$0xff]
    %v198 = vld [vmem:[#allocation5 + $0x348] sm:$0xff]
    %v199 = vld [vmem:[#allocation5 + $0x350] sm:$0xff]
    %v200 = vld [vmem:[#allocation5 + $0x358] sm:$0xff]
    %v201 = vld [vmem:[#allocation5 + $0x360] sm:$0xff]
    %v202 = vld [vmem:[#allocation5 + $0x368] sm:$0xff]
    %v203 = vld [vmem:[#allocation5 + $0x370] sm:$0xff]
    %v204 = vld [vmem:[#allocation5 + $0x378] sm:$0xff]
    %v205 = vld [vmem:[#allocation5 + $0x380] sm:$0xff]
    %v206 = vld [vmem:[#allocation5 + $0x388] sm:$0xff]
    %v207 = vld [vmem:[#allocation5 + $0x390] sm:$0xff]
    %v208 = vld [vmem:[#allocation5 + $0x398] sm:$0xff]
    %v209 = vld [vmem:[#allocation5 + $0x3a0] sm:$0xff]
    %v210 = vld [vmem:[#allocation5 + $0x3a8] sm:$0xff]
    %v211 = vld [vmem:[#allocation5 + $0x3b0] sm:$0xff]
    %v212 = vld [vmem:[#allocation5 + $0x3b8] sm:$0xff]
    %v213 = vld [vmem:[#allocation5 + $0x3c0] sm:$0xff]
    %v214 = vld [vmem:[#allocation5 + $0x3c8] sm:$0xff]
    %v215 = vld [vmem:[#allocation5 + $0x3d0] sm:$0xff]
    %v216 = vld [vmem:[#allocation5 + $0x3d8] sm:$0xff]
    %v217 = vld [vmem:[#allocation5 + $0x3e0] sm:$0xff]
    %v218 = vld [vmem:[#allocation5 + $0x3e8] sm:$0xff]
    %v219 = vld [vmem:[#allocation5 + $0x3f0] sm:$0xff]
    %v220 = vld [vmem:[#allocation5 + $0x3f8] sm:$0xff]
    %v221 = vld [vmem:[#allocation5 + $0x400] sm:$0xff]
    %v222 = vld [vmem:[#allocation5 + $0x408] sm:$0xff]
    %v223 = vld [vmem:[#allocation5 + $0x410] sm:$0xff]
    %v224 = vld [vmem:[#allocation5 + $0x418] sm:$0xff]
    %v225 = vld [vmem:[#allocation5 + $0x420] sm:$0xff]
    %v226 = vld [vmem:[#allocation5 + $0x428] sm:$0xff]
    %v227 = vld [vmem:[#allocation5 + $0x430] sm:$0xff]
    %v228 = vld [vmem:[#allocation5 + $0x438] sm:$0xff]
    %v229 = vld [vmem:[#allocation5 + $0x440] sm:$0xff]
    %v230 = vld [vmem:[#allocation5 + $0x448] sm:$0xff]
    %v231 = vld [vmem:[#allocation5 + $0x450] sm:$0xff]
    %v232 = vld [vmem:[#allocation5 + $0x458] sm:$0xff]
    %v233 = vld [vmem:[#allocation5 + $0x460] sm:$0xff]
    %v234 = vld [vmem:[#allocation5 + $0x468] sm:$0xff]
    %v235 = vld [vmem:[#allocation5 + $0x470] sm:$0xff]
    %v236 = vld [vmem:[#allocation5 + $0x478] sm:$0xff]
    %v237 = vld [vmem:[#allocation5 + $0x480] sm:$0xff]
    %v238 = vld [vmem:[#allocation5 + $0x488] sm:$0xff]
    %v239 = vld [vmem:[#allocation5 + $0x490] sm:$0xff]
    %v240 = vld [vmem:[#allocation5 + $0x498] sm:$0xff]
    %v241 = vld [vmem:[#allocation5 + $0x4a0] sm:$0xff]
    %v242 = vld [vmem:[#allocation5 + $0x4a8] sm:$0xff]
    %v243 = vld [vmem:[#allocation5 + $0x4b0] sm:$0xff]
    %v244 = vld [vmem:[#allocation5 + $0x4b8] sm:$0xff]
    %v245 = vld [vmem:[#allocation5 + $0x4c0] sm:$0xff]
    %v246 = vld [vmem:[#allocation5 + $0x4c8] sm:$0xff]
    %v247 = vld [vmem:[#allocation5 + $0x4d0] sm:$0xff]
    %v248 = vld [vmem:[#allocation5 + $0x4d8] sm:$0xff]
    %v249 = vld [vmem:[#allocation5 + $0x4e0] sm:$0xff]
    %v250 = vld [vmem:[#allocation5 + $0x4e8] sm:$0xff]
    %v251 = vld [vmem:[#allocation5 + $0x4f0] sm:$0xff]
    %v252 = vld [vmem:[#allocation5 + $0x4f8] sm:$0xff]
    %v253 = vld [vmem:[#allocation5 + $0x500] sm:$0xff]
    %v254 = vld [vmem:[#allocation5 + $0x508] sm:$0xff]
    %v255 = vld [vmem:[#allocation5 + $0x510] sm:$0xff]
    %v256 = vld [vmem:[#allocation5 + $0x518] sm:$0xff]
    %v257 = vld [vmem:[#allocation5 + $0x520] sm:$0xff]
    %v258 = vld [vmem:[#allocation5 + $0x528] sm:$0xff]
    %v259 = vld [vmem:[#allocation5 + $0x530] sm:$0xff]
    %v260 = vld [vmem:[#allocation5 + $0x538] sm:$0xff]
    %v261 = vld [vmem:[#allocation5 + $0x540] sm:$0xff]
    %v262 = vld [vmem:[#allocation5 + $0x548] sm:$0xff]
    %v263 = vld [vmem:[#allocation5 + $0x550] sm:$0xff]
    %v264 = vld [vmem:[#allocation5 + $0x558] sm:$0xff]
    %v265 = vld [vmem:[#allocation5 + $0x560] sm:$0xff]
    %v266 = vld [vmem:[#allocation5 + $0x568] sm:$0xff]
    %v267 = vld [vmem:[#allocation5 + $0x570] sm:$0xff]
    %v268 = vld [vmem:[#allocation5 + $0x578] sm:$0xff]
    %v269 = vld [vmem:[#allocation5 + $0x580] sm:$0xff]
    %v270 = vld [vmem:[#allocation5 + $0x588] sm:$0xff]
    %v271 = vld [vmem:[#allocation5 + $0x590] sm:$0xff]
    %v272 = vld [vmem:[#allocation5 + $0x598] sm:$0xff]
    %v273 = vld [vmem:[#allocation5 + $0x5a0] sm:$0xff]
    %v274 = vld [vmem:[#allocation5 + $0x5a8] sm:$0xff]
    %v275 = vld [vmem:[#allocation5 + $0x5b0] sm:$0xff]
    %v276 = vld [vmem:[#allocation5 + $0x5b8] sm:$0xff]
    %v277 = vld [vmem:[#allocation5 + $0x5c0] sm:$0xff]
    %v278 = vld [vmem:[#allocation5 + $0x5c8] sm:$0xff]
    %v279 = vld [vmem:[#allocation5 + $0x5d0] sm:$0xff]
    %v280 = vld [vmem:[#allocation5 + $0x5d8] sm:$0xff]
    %v281 = vld [vmem:[#allocation5 + $0x5e0] sm:$0xff]
    %v282 = vld [vmem:[#allocation5 + $0x5e8] sm:$0xff]
    %v283 = vld [vmem:[#allocation5 + $0x5f0] sm:$0xff]
    %v284 = vld [vmem:[#allocation5 + $0x5f8] sm:$0xff]
    %v285 = vld [vmem:[#allocation5 + $0x600] sm:$0xff]
    %v286 = vld [vmem:[#allocation5 + $0x608] sm:$0xff]
    %v287 = vld [vmem:[#allocation5 + $0x610] sm:$0xff]
    %v288 = vld [vmem:[#allocation5 + $0x618] sm:$0xff]
    %v289 = vld [vmem:[#allocation5 + $0x620] sm:$0xff]
    %v290 = vld [vmem:[#allocation5 + $0x628] sm:$0xff]
    %v291 = vld [vmem:[#allocation5 + $0x630] sm:$0xff]
    %v292 = vld [vmem:[#allocation5 + $0x638] sm:$0xff]
    %v293 = vld [vmem:[#allocation5 + $0x640] sm:$0xff]
    %v294 = vld [vmem:[#allocation5 + $0x648] sm:$0xff]
    %v295 = vld [vmem:[#allocation5 + $0x650] sm:$0xff]
    %v296 = vld [vmem:[#allocation5 + $0x658] sm:$0xff]
    %v297 = vld [vmem:[#allocation5 + $0x660] sm:$0xff]
    %v298 = vld [vmem:[#allocation5 + $0x668] sm:$0xff]
    %v299 = vld [vmem:[#allocation5 + $0x670] sm:$0xff]
    %v300 = vld [vmem:[#allocation5 + $0x678] sm:$0xff]
    %v301 = vld [vmem:[#allocation5 + $0x680] sm:$0xff]
    %v302 = vld [vmem:[#allocation5 + $0x688] sm:$0xff]
    %v303 = vld [vmem:[#allocation5 + $0x690] sm:$0xff]
    %v304 = vld [vmem:[#allocation5 + $0x698] sm:$0xff]
    %v305 = vld [vmem:[#allocation5 + $0x6a0] sm:$0xff]
    %v306 = vld [vmem:[#allocation5 + $0x6a8] sm:$0xff]
    %v307 = vld [vmem:[#allocation5 + $0x6b0] sm:$0xff]
    %v308 = vld [vmem:[#allocation5 + $0x6b8] sm:$0xff]
    %v309 = vld [vmem:[#allocation5 + $0x6c0] sm:$0xff]
    %v310 = vld [vmem:[#allocation5 + $0x6c8] sm:$0xff]
    %v311 = vld [vmem:[#allocation5 + $0x6d0] sm:$0xff]
    %v312 = vld [vmem:[#allocation5 + $0x6d8] sm:$0xff]
    %v313 = vld [vmem:[#allocation5 + $0x6e0] sm:$0xff]
    %v314 = vld [vmem:[#allocation5 + $0x6e8] sm:$0xff]
    %v315 = vld [vmem:[#allocation5 + $0x6f0] sm:$0xff]
    %v316 = vld [vmem:[#allocation5 + $0x6f8] sm:$0xff]
    %v317 = vld [vmem:[#allocation5 + $0x700] sm:$0xff]
    %v318 = vld [vmem:[#allocation5 + $0x708] sm:$0xff]
    %v319 = vld [vmem:[#allocation5 + $0x710] sm:$0xff]
    %v320 = vld [vmem:[#allocation5 + $0x718] sm:$0xff]
    %v321 = vld [vmem:[#allocation5 + $0x720] sm:$0xff]
    %v322 = vld [vmem:[#allocation5 + $0x728] sm:$0xff]
    %v323 = vld [vmem:[#allocation5 + $0x730] sm:$0xff]
    %v324 = vld [vmem:[#allocation5 + $0x738] sm:$0xff]
    %v325 = vld [vmem:[#allocation5 + $0x740] sm:$0xff]
    %v326 = vld [vmem:[#allocation5 + $0x748] sm:$0xff]
    %v327 = vld [vmem:[#allocation5 + $0x750] sm:$0xff]
    %v328 = vld [vmem:[#allocation5 + $0x758] sm:$0xff]
    %v329 = vld [vmem:[#allocation5 + $0x760] sm:$0xff]
    %v330 = vld [vmem:[#allocation5 + $0x768] sm:$0xff]
    %v331 = vld [vmem:[#allocation5 + $0x770] sm:$0xff]
    %v332 = vld [vmem:[#allocation5 + $0x778] sm:$0xff]
    %v333 = vld [vmem:[#allocation5 + $0x780] sm:$0xff]
    %v334 = vld [vmem:[#allocation5 + $0x788] sm:$0xff]
    %v335 = vld [vmem:[#allocation5 + $0x790] sm:$0xff]
    %v336 = vld [vmem:[#allocation5 + $0x798] sm:$0xff]
    %v337 = vld [vmem:[#allocation5 + $0x7a0] sm:$0xff]
    %v338 = vld [vmem:[#allocation5 + $0x7a8] sm:$0xff]
    %v339 = vld [vmem:[#allocation5 + $0x7b0] sm:$0xff]
    %v340 = vld [vmem:[#allocation5 + $0x7b8] sm:$0xff]
    %v341 = vld [vmem:[#allocation5 + $0x7c0] sm:$0xff]
    %v342 = vld [vmem:[#allocation5 + $0x7c8] sm:$0xff]
    %v343 = vld [vmem:[#allocation5 + $0x7d0] sm:$0xff]
    %v344 = vld [vmem:[#allocation5 + $0x7d8] sm:$0xff]
    %v345 = vld [vmem:[#allocation5 + $0x7e0] sm:$0xff]
    %v346 = vld [vmem:[#allocation5 + $0x7e8] sm:$0xff]
    %v347 = vld [vmem:[#allocation5 + $0x7f0] sm:$0xff]
    %v348 = vld [vmem:[#allocation5 + $0x7f8] sm:$0xff]
    %v349 = vld [vmem:[#allocation7] sm:$0xf]
    %v351 = vlaneseq
    %v352 = vshrl.u32 %v351, 7
    %v353 = vsub.s32 0, %v352
    %v354 = vrot.slane %v349, %v353
    %v355 = vlaneseq
    %v356 = vshrl.u32 %v355, 7
    %v357 = vsub.s32 1, %v356
    %v358 = vrot.slane %v349, %v357
    %v359 = vlaneseq
    %v360 = vshrl.u32 %v359, 7
    %v361 = vsub.s32 2, %v360
    %v362 = vrot.slane %v349, %v361
    %v363 = vlaneseq
    %v364 = vshrl.u32 %v363, 7
    %v365 = vsub.s32 3, %v364
    %v366 = vrot.slane %v349, %v365
    %v372 = vcombine.high %v92, %v92
    %v374 = vunpack.c.l.s4 1966171168
    %v375 = vunpack.c.0.s8 %v374
    %v376 = vlaneseq
    %v377 = vshrl.u32 %v376, 7
    %v378 = vsub.s32 %v375, %v377
    %v379 = vrot.slane %v92, %v378
    %v381 = vunpack.c.l.s4 1966171168
    %v382 = vunpack.c.0.s8 %v381
    %v383 = vlaneseq
    %v384 = vshrl.u32 %v383, 7
    %v385 = vsub.s32 %v382, %v384
    %v386 = vrot.slane %v372, %v385
    %v387 = vcombine.high %v379, %v379
    %v388 = vcombine.high %v386, %v386
    %v390 = vunpack.c.l.s4 1966171168
    %v391 = vunpack.c.0.s8 %v390
    %v392 = vlaneseq
    %v393 = vshrl.u32 %v392, 7
    %v394 = vsub.s32 %v391, %v393
    %v395 = vrot.slane %v379, %v394
    %v397 = vunpack.c.l.s4 1966171168
    %v398 = vunpack.c.0.s8 %v397
    %v399 = vlaneseq
    %v400 = vshrl.u32 %v399, 7
    %v401 = vsub.s32 %v398, %v400
    %v402 = vrot.slane %v386, %v401
    %v404 = vunpack.c.l.s4 1966171168
    %v405 = vunpack.c.0.s8 %v404
    %v406 = vlaneseq
    %v407 = vshrl.u32 %v406, 7
    %v408 = vsub.s32 %v405, %v407
    %v409 = vrot.slane %v387, %v408
    %v411 = vunpack.c.l.s4 1966171168
    %v412 = vunpack.c.0.s8 %v411
    %v413 = vlaneseq
    %v414 = vshrl.u32 %v413, 7
    %v415 = vsub.s32 %v412, %v414
    %v416 = vrot.slane %v388, %v415
    %v417 = vcombine.high %v395, %v395
    %v418 = vcombine.high %v402, %v402
    %v419 = vcombine.high %v409, %v409
    %v420 = vcombine.high %v416, %v416
    %v685 = vunpack.c.l.b16 %v93
    %v686 = vunpack.c.h.b16 %v93
    %v687 = vunpack.c.l.b16 %v94
    %v688 = vunpack.c.h.b16 %v94
    %v689 = vunpack.c.l.b16 %v95
    %v690 = vunpack.c.h.b16 %v95
    %v691 = vunpack.c.l.b16 %v96
    %v692 = vunpack.c.h.b16 %v96
    %v693 = vunpack.c.l.b16 %v97
    %v694 = vunpack.c.h.b16 %v97
    %v695 = vunpack.c.l.b16 %v98
    %v696 = vunpack.c.h.b16 %v98
    %v697 = vunpack.c.l.b16 %v99
    %v698 = vunpack.c.h.b16 %v99
    %v699 = vunpack.c.l.b16 %v100
    %v700 = vunpack.c.h.b16 %v100
    %v701 = vunpack.c.l.b16 %v101
    %v702 = vunpack.c.h.b16 %v101
    %v703 = vunpack.c.l.b16 %v102
    %v704 = vunpack.c.h.b16 %v102
    %v705 = vunpack.c.l.b16 %v103
    %v706 = vunpack.c.h.b16 %v103
    %v707 = vunpack.c.l.b16 %v104
    %v708 = vunpack.c.h.b16 %v104
    %v709 = vunpack.c.l.b16 %v105
    %v710 = vunpack.c.h.b16 %v105
    %v711 = vunpack.c.l.b16 %v106
    %v712 = vunpack.c.h.b16 %v106
    %v713 = vunpack.c.l.b16 %v107
    %v714 = vunpack.c.h.b16 %v107
    %v715 = vunpack.c.l.b16 %v108
    %v716 = vunpack.c.h.b16 %v108
    %v717 = vunpack.c.l.b16 %v109
    %v718 = vunpack.c.h.b16 %v109
    %v719 = vunpack.c.l.b16 %v110
    %v720 = vunpack.c.h.b16 %v110
    %v721 = vunpack.c.l.b16 %v111
    %v722 = vunpack.c.h.b16 %v111
    %v723 = vunpack.c.l.b16 %v112
    %v724 = vunpack.c.h.b16 %v112
    %v725 = vunpack.c.l.b16 %v113
    %v726 = vunpack.c.h.b16 %v113
    %v727 = vunpack.c.l.b16 %v114
    %v728 = vunpack.c.h.b16 %v114
    %v729 = vunpack.c.l.b16 %v115
    %v730 = vunpack.c.h.b16 %v115
    %v731 = vunpack.c.l.b16 %v116
    %v732 = vunpack.c.h.b16 %v116
    %v733 = vunpack.c.l.b16 %v117
    %v734 = vunpack.c.h.b16 %v117
    %v735 = vunpack.c.l.b16 %v118
    %v736 = vunpack.c.h.b16 %v118
    %v737 = vunpack.c.l.b16 %v119
    %v738 = vunpack.c.h.b16 %v119
    %v739 = vunpack.c.l.b16 %v120
    %v740 = vunpack.c.h.b16 %v120
    %v741 = vunpack.c.l.b16 %v121
    %v742 = vunpack.c.h.b16 %v121
    %v743 = vunpack.c.l.b16 %v122
    %v744 = vunpack.c.h.b16 %v122
    %v745 = vunpack.c.l.b16 %v123
    %v746 = vunpack.c.h.b16 %v123
    %v747 = vunpack.c.l.b16 %v124
    %v748 = vunpack.c.h.b16 %v124
    %v749 = vunpack.c.l.b16 %v125
    %v750 = vunpack.c.h.b16 %v125
    %v751 = vunpack.c.l.b16 %v126
    %v752 = vunpack.c.h.b16 %v126
    %v753 = vunpack.c.l.b16 %v127
    %v754 = vunpack.c.h.b16 %v127
    %v755 = vunpack.c.l.b16 %v128
    %v756 = vunpack.c.h.b16 %v128
    %v757 = vunpack.c.l.b16 %v129
    %v758 = vunpack.c.h.b16 %v129
    %v759 = vunpack.c.l.b16 %v130
    %v760 = vunpack.c.h.b16 %v130
    %v761 = vunpack.c.l.b16 %v131
    %v762 = vunpack.c.h.b16 %v131
    %v763 = vunpack.c.l.b16 %v132
    %v764 = vunpack.c.h.b16 %v132
    %v765 = vunpack.c.l.b16 %v133
    %v766 = vunpack.c.h.b16 %v133
    %v767 = vunpack.c.l.b16 %v134
    %v768 = vunpack.c.h.b16 %v134
    %v769 = vunpack.c.l.b16 %v135
    %v770 = vunpack.c.h.b16 %v135
    %v771 = vunpack.c.l.b16 %v136
    %v772 = vunpack.c.h.b16 %v136
    %v773 = vunpack.c.l.b16 %v137
    %v774 = vunpack.c.h.b16 %v137
    %v775 = vunpack.c.l.b16 %v138
    %v776 = vunpack.c.h.b16 %v138
    %v777 = vunpack.c.l.b16 %v139
    %v778 = vunpack.c.h.b16 %v139
    %v779 = vunpack.c.l.b16 %v140
    %v780 = vunpack.c.h.b16 %v140
    %v781 = vunpack.c.l.b16 %v141
    %v782 = vunpack.c.h.b16 %v141
    %v783 = vunpack.c.l.b16 %v142
    %v784 = vunpack.c.h.b16 %v142
    %v785 = vunpack.c.l.b16 %v143
    %v786 = vunpack.c.h.b16 %v143
    %v787 = vunpack.c.l.b16 %v144
    %v788 = vunpack.c.h.b16 %v144
    %v789 = vunpack.c.l.b16 %v145
    %v790 = vunpack.c.h.b16 %v145
    %v791 = vunpack.c.l.b16 %v146
    %v792 = vunpack.c.h.b16 %v146
    %v793 = vunpack.c.l.b16 %v147
    %v794 = vunpack.c.h.b16 %v147
    %v795 = vunpack.c.l.b16 %v148
    %v796 = vunpack.c.h.b16 %v148
    %v797 = vunpack.c.l.b16 %v149
    %v798 = vunpack.c.h.b16 %v149
    %v799 = vunpack.c.l.b16 %v150
    %v800 = vunpack.c.h.b16 %v150
    %v801 = vunpack.c.l.b16 %v151
    %v802 = vunpack.c.h.b16 %v151
    %v803 = vunpack.c.l.b16 %v152
    %v804 = vunpack.c.h.b16 %v152
    %v805 = vunpack.c.l.b16 %v153
    %v806 = vunpack.c.h.b16 %v153
    %v807 = vunpack.c.l.b16 %v154
    %v808 = vunpack.c.h.b16 %v154
    %v809 = vunpack.c.l.b16 %v155
    %v810 = vunpack.c.h.b16 %v155
    %v811 = vunpack.c.l.b16 %v156
    %v812 = vunpack.c.h.b16 %v156
    %v813 = vunpack.c.l.b16 %v157
    %v814 = vunpack.c.h.b16 %v157
    %v815 = vunpack.c.l.b16 %v158
    %v816 = vunpack.c.h.b16 %v158
    %v817 = vunpack.c.l.b16 %v159
    %v818 = vunpack.c.h.b16 %v159
    %v819 = vunpack.c.l.b16 %v160
    %v820 = vunpack.c.h.b16 %v160
    %v821 = vunpack.c.l.b16 %v161
    %v822 = vunpack.c.h.b16 %v161
    %v823 = vunpack.c.l.b16 %v162
    %v824 = vunpack.c.h.b16 %v162
    %v825 = vunpack.c.l.b16 %v163
    %v826 = vunpack.c.h.b16 %v163
    %v827 = vunpack.c.l.b16 %v164
    %v828 = vunpack.c.h.b16 %v164
    %v829 = vunpack.c.l.b16 %v165
    %v830 = vunpack.c.h.b16 %v165
    %v831 = vunpack.c.l.b16 %v166
    %v832 = vunpack.c.h.b16 %v166
    %v833 = vunpack.c.l.b16 %v167
    %v834 = vunpack.c.h.b16 %v167
    %v835 = vunpack.c.l.b16 %v168
    %v836 = vunpack.c.h.b16 %v168
    %v837 = vunpack.c.l.b16 %v169
    %v838 = vunpack.c.h.b16 %v169
    %v839 = vunpack.c.l.b16 %v170
    %v840 = vunpack.c.h.b16 %v170
    %v841 = vunpack.c.l.b16 %v171
    %v842 = vunpack.c.h.b16 %v171
    %v843 = vunpack.c.l.b16 %v172
    %v844 = vunpack.c.h.b16 %v172
    %v845 = vunpack.c.l.b16 %v173
    %v846 = vunpack.c.h.b16 %v173
    %v847 = vunpack.c.l.b16 %v174
    %v848 = vunpack.c.h.b16 %v174
    %v849 = vunpack.c.l.b16 %v175
    %v850 = vunpack.c.h.b16 %v175
    %v851 = vunpack.c.l.b16 %v176
    %v852 = vunpack.c.h.b16 %v176
    %v853 = vunpack.c.l.b16 %v177
    %v854 = vunpack.c.h.b16 %v177
    %v855 = vunpack.c.l.b16 %v178
    %v856 = vunpack.c.h.b16 %v178
    %v857 = vunpack.c.l.b16 %v179
    %v858 = vunpack.c.h.b16 %v179
    %v859 = vunpack.c.l.b16 %v180
    %v860 = vunpack.c.h.b16 %v180
    %v861 = vunpack.c.l.b16 %v181
    %v862 = vunpack.c.h.b16 %v181
    %v863 = vunpack.c.l.b16 %v182
    %v864 = vunpack.c.h.b16 %v182
    %v865 = vunpack.c.l.b16 %v183
    %v866 = vunpack.c.h.b16 %v183
    %v867 = vunpack.c.l.b16 %v184
    %v868 = vunpack.c.h.b16 %v184
    %v869 = vunpack.c.l.b16 %v185
    %v870 = vunpack.c.h.b16 %v185
    %v871 = vunpack.c.l.b16 %v186
    %v872 = vunpack.c.h.b16 %v186
    %v873 = vunpack.c.l.b16 %v187
    %v874 = vunpack.c.h.b16 %v187
    %v875 = vunpack.c.l.b16 %v188
    %v876 = vunpack.c.h.b16 %v188
    %v877 = vunpack.c.l.b16 %v189
    %v878 = vunpack.c.h.b16 %v189
    %v879 = vunpack.c.l.b16 %v190
    %v880 = vunpack.c.h.b16 %v190
    %v881 = vunpack.c.l.b16 %v191
    %v882 = vunpack.c.h.b16 %v191
    %v883 = vunpack.c.l.b16 %v192
    %v884 = vunpack.c.h.b16 %v192
    %v885 = vunpack.c.l.b16 %v193
    %v886 = vunpack.c.h.b16 %v193
    %v887 = vunpack.c.l.b16 %v194
    %v888 = vunpack.c.h.b16 %v194
    %v889 = vunpack.c.l.b16 %v195
    %v890 = vunpack.c.h.b16 %v195
    %v891 = vunpack.c.l.b16 %v196
    %v892 = vunpack.c.h.b16 %v196
    %v893 = vunpack.c.l.b16 %v197
    %v894 = vunpack.c.h.b16 %v197
    %v895 = vunpack.c.l.b16 %v198
    %v896 = vunpack.c.h.b16 %v198
    %v897 = vunpack.c.l.b16 %v199
    %v898 = vunpack.c.h.b16 %v199
    %v899 = vunpack.c.l.b16 %v200
    %v900 = vunpack.c.h.b16 %v200
    %v901 = vunpack.c.l.b16 %v201
    %v902 = vunpack.c.h.b16 %v201
    %v903 = vunpack.c.l.b16 %v202
    %v904 = vunpack.c.h.b16 %v202
    %v905 = vunpack.c.l.b16 %v203
    %v906 = vunpack.c.h.b16 %v203
    %v907 = vunpack.c.l.b16 %v204
    %v908 = vunpack.c.h.b16 %v204
    %v909 = vunpack.c.l.b16 %v205
    %v910 = vunpack.c.h.b16 %v205
    %v911 = vunpack.c.l.b16 %v206
    %v912 = vunpack.c.h.b16 %v206
    %v913 = vunpack.c.l.b16 %v207
    %v914 = vunpack.c.h.b16 %v207
    %v915 = vunpack.c.l.b16 %v208
    %v916 = vunpack.c.h.b16 %v208
    %v917 = vunpack.c.l.b16 %v209
    %v918 = vunpack.c.h.b16 %v209
    %v919 = vunpack.c.l.b16 %v210
    %v920 = vunpack.c.h.b16 %v210
    %v921 = vunpack.c.l.b16 %v211
    %v922 = vunpack.c.h.b16 %v211
    %v923 = vunpack.c.l.b16 %v212
    %v924 = vunpack.c.h.b16 %v212
    %v925 = vunpack.c.l.b16 %v213
    %v926 = vunpack.c.h.b16 %v213
    %v927 = vunpack.c.l.b16 %v214
    %v928 = vunpack.c.h.b16 %v214
    %v929 = vunpack.c.l.b16 %v215
    %v930 = vunpack.c.h.b16 %v215
    %v931 = vunpack.c.l.b16 %v216
    %v932 = vunpack.c.h.b16 %v216
    %v933 = vunpack.c.l.b16 %v217
    %v934 = vunpack.c.h.b16 %v217
    %v935 = vunpack.c.l.b16 %v218
    %v936 = vunpack.c.h.b16 %v218
    %v937 = vunpack.c.l.b16 %v219
    %v938 = vunpack.c.h.b16 %v219
    %v939 = vunpack.c.l.b16 %v220
    %v940 = vunpack.c.h.b16 %v220
    %v941 = vunpack.c.l.b16 %v221
    %v942 = vunpack.c.h.b16 %v221
    %v943 = vunpack.c.l.b16 %v222
    %v944 = vunpack.c.h.b16 %v222
    %v945 = vunpack.c.l.b16 %v223
    %v946 = vunpack.c.h.b16 %v223
    %v947 = vunpack.c.l.b16 %v224
    %v948 = vunpack.c.h.b16 %v224
    %v949 = vunpack.c.l.b16 %v225
    %v950 = vunpack.c.h.b16 %v225
    %v951 = vunpack.c.l.b16 %v226
    %v952 = vunpack.c.h.b16 %v226
    %v953 = vunpack.c.l.b16 %v227
    %v954 = vunpack.c.h.b16 %v227
    %v955 = vunpack.c.l.b16 %v228
    %v956 = vunpack.c.h.b16 %v228
    %v957 = vunpack.c.l.b16 %v229
    %v958 = vunpack.c.h.b16 %v229
    %v959 = vunpack.c.l.b16 %v230
    %v960 = vunpack.c.h.b16 %v230
    %v961 = vunpack.c.l.b16 %v231
    %v962 = vunpack.c.h.b16 %v231
    %v963 = vunpack.c.l.b16 %v232
    %v964 = vunpack.c.h.b16 %v232
    %v965 = vunpack.c.l.b16 %v233
    %v966 = vunpack.c.h.b16 %v233
    %v967 = vunpack.c.l.b16 %v234
    %v968 = vunpack.c.h.b16 %v234
    %v969 = vunpack.c.l.b16 %v235
    %v970 = vunpack.c.h.b16 %v235
    %v971 = vunpack.c.l.b16 %v236
    %v972 = vunpack.c.h.b16 %v236
    %v973 = vunpack.c.l.b16 %v237
    %v974 = vunpack.c.h.b16 %v237
    %v975 = vunpack.c.l.b16 %v238
    %v976 = vunpack.c.h.b16 %v238
    %v977 = vunpack.c.l.b16 %v239
    %v978 = vunpack.c.h.b16 %v239
    %v979 = vunpack.c.l.b16 %v240
    %v980 = vunpack.c.h.b16 %v240
    %v981 = vunpack.c.l.b16 %v241
    %v982 = vunpack.c.h.b16 %v241
    %v983 = vunpack.c.l.b16 %v242
    %v984 = vunpack.c.h.b16 %v242
    %v985 = vunpack.c.l.b16 %v243
    %v986 = vunpack.c.h.b16 %v243
    %v987 = vunpack.c.l.b16 %v244
    %v988 = vunpack.c.h.b16 %v244
    %v989 = vunpack.c.l.b16 %v245
    %v990 = vunpack.c.h.b16 %v245
    %v991 = vunpack.c.l.b16 %v246
    %v992 = vunpack.c.h.b16 %v246
    %v993 = vunpack.c.l.b16 %v247
    %v994 = vunpack.c.h.b16 %v247
    %v995 = vunpack.c.l.b16 %v248
    %v996 = vunpack.c.h.b16 %v248
    %v997 = vunpack.c.l.b16 %v249
    %v998 = vunpack.c.h.b16 %v249
    %v999 = vunpack.c.l.b16 %v250
    %v1000 = vunpack.c.h.b16 %v250
    %v1001 = vunpack.c.l.b16 %v251
    %v1002 = vunpack.c.h.b16 %v251
    %v1003 = vunpack.c.l.b16 %v252
    %v1004 = vunpack.c.h.b16 %v252
    %v1005 = vunpack.c.l.b16 %v253
    %v1006 = vunpack.c.h.b16 %v253
    %v1007 = vunpack.c.l.b16 %v254
    %v1008 = vunpack.c.h.b16 %v254
    %v1009 = vunpack.c.l.b16 %v255
    %v1010 = vunpack.c.h.b16 %v255
    %v1011 = vunpack.c.l.b16 %v256
    %v1012 = vunpack.c.h.b16 %v256
    %v1013 = vunpack.c.l.b16 %v257
    %v1014 = vunpack.c.h.b16 %v257
    %v1015 = vunpack.c.l.b16 %v258
    %v1016 = vunpack.c.h.b16 %v258
    %v1017 = vunpack.c.l.b16 %v259
    %v1018 = vunpack.c.h.b16 %v259
    %v1019 = vunpack.c.l.b16 %v260
    %v1020 = vunpack.c.h.b16 %v260
    %v1021 = vunpack.c.l.b16 %v261
    %v1022 = vunpack.c.h.b16 %v261
    %v1023 = vunpack.c.l.b16 %v262
    %v1024 = vunpack.c.h.b16 %v262
    %v1025 = vunpack.c.l.b16 %v263
    %v1026 = vunpack.c.h.b16 %v263
    %v1027 = vunpack.c.l.b16 %v264
    %v1028 = vunpack.c.h.b16 %v264
    %v1029 = vunpack.c.l.b16 %v265
    %v1030 = vunpack.c.h.b16 %v265
    %v1031 = vunpack.c.l.b16 %v266
    %v1032 = vunpack.c.h.b16 %v266
    %v1033 = vunpack.c.l.b16 %v267
    %v1034 = vunpack.c.h.b16 %v267
    %v1035 = vunpack.c.l.b16 %v268
    %v1036 = vunpack.c.h.b16 %v268
    %v1037 = vunpack.c.l.b16 %v269
    %v1038 = vunpack.c.h.b16 %v269
    %v1039 = vunpack.c.l.b16 %v270
    %v1040 = vunpack.c.h.b16 %v270
    %v1041 = vunpack.c.l.b16 %v271
    %v1042 = vunpack.c.h.b16 %v271
    %v1043 = vunpack.c.l.b16 %v272
    %v1044 = vunpack.c.h.b16 %v272
    %v1045 = vunpack.c.l.b16 %v273
    %v1046 = vunpack.c.h.b16 %v273
    %v1047 = vunpack.c.l.b16 %v274
    %v1048 = vunpack.c.h.b16 %v274
    %v1049 = vunpack.c.l.b16 %v275
    %v1050 = vunpack.c.h.b16 %v275
    %v1051 = vunpack.c.l.b16 %v276
    %v1052 = vunpack.c.h.b16 %v276
    %v1053 = vunpack.c.l.b16 %v277
    %v1054 = vunpack.c.h.b16 %v277
    %v1055 = vunpack.c.l.b16 %v278
    %v1056 = vunpack.c.h.b16 %v278
    %v1057 = vunpack.c.l.b16 %v279
    %v1058 = vunpack.c.h.b16 %v279
    %v1059 = vunpack.c.l.b16 %v280
    %v1060 = vunpack.c.h.b16 %v280
    %v1061 = vunpack.c.l.b16 %v281
    %v1062 = vunpack.c.h.b16 %v281
    %v1063 = vunpack.c.l.b16 %v282
    %v1064 = vunpack.c.h.b16 %v282
    %v1065 = vunpack.c.l.b16 %v283
    %v1066 = vunpack.c.h.b16 %v283
    %v1067 = vunpack.c.l.b16 %v284
    %v1068 = vunpack.c.h.b16 %v284
    %v1069 = vunpack.c.l.b16 %v285
    %v1070 = vunpack.c.h.b16 %v285
    %v1071 = vunpack.c.l.b16 %v286
    %v1072 = vunpack.c.h.b16 %v286
    %v1073 = vunpack.c.l.b16 %v287
    %v1074 = vunpack.c.h.b16 %v287
    %v1075 = vunpack.c.l.b16 %v288
    %v1076 = vunpack.c.h.b16 %v288
    %v1077 = vunpack.c.l.b16 %v289
    %v1078 = vunpack.c.h.b16 %v289
    %v1079 = vunpack.c.l.b16 %v290
    %v1080 = vunpack.c.h.b16 %v290
    %v1081 = vunpack.c.l.b16 %v291
    %v1082 = vunpack.c.h.b16 %v291
    %v1083 = vunpack.c.l.b16 %v292
    %v1084 = vunpack.c.h.b16 %v292
    %v1085 = vunpack.c.l.b16 %v293
    %v1086 = vunpack.c.h.b16 %v293
    %v1087 = vunpack.c.l.b16 %v294
    %v1088 = vunpack.c.h.b16 %v294
    %v1089 = vunpack.c.l.b16 %v295
    %v1090 = vunpack.c.h.b16 %v295
    %v1091 = vunpack.c.l.b16 %v296
    %v1092 = vunpack.c.h.b16 %v296
    %v1093 = vunpack.c.l.b16 %v297
    %v1094 = vunpack.c.h.b16 %v297
    %v1095 = vunpack.c.l.b16 %v298
    %v1096 = vunpack.c.h.b16 %v298
    %v1097 = vunpack.c.l.b16 %v299
    %v1098 = vunpack.c.h.b16 %v299
    %v1099 = vunpack.c.l.b16 %v300
    %v1100 = vunpack.c.h.b16 %v300
    %v1101 = vunpack.c.l.b16 %v301
    %v1102 = vunpack.c.h.b16 %v301
    %v1103 = vunpack.c.l.b16 %v302
    %v1104 = vunpack.c.h.b16 %v302
    %v1105 = vunpack.c.l.b16 %v303
    %v1106 = vunpack.c.h.b16 %v303
    %v1107 = vunpack.c.l.b16 %v304
    %v1108 = vunpack.c.h.b16 %v304
    %v1109 = vunpack.c.l.b16 %v305
    %v1110 = vunpack.c.h.b16 %v305
    %v1111 = vunpack.c.l.b16 %v306
    %v1112 = vunpack.c.h.b16 %v306
    %v1113 = vunpack.c.l.b16 %v307
    %v1114 = vunpack.c.h.b16 %v307
    %v1115 = vunpack.c.l.b16 %v308
    %v1116 = vunpack.c.h.b16 %v308
    %v1117 = vunpack.c.l.b16 %v309
    %v1118 = vunpack.c.h.b16 %v309
    %v1119 = vunpack.c.l.b16 %v310
    %v1120 = vunpack.c.h.b16 %v310
    %v1121 = vunpack.c.l.b16 %v311
    %v1122 = vunpack.c.h.b16 %v311
    %v1123 = vunpack.c.l.b16 %v312
    %v1124 = vunpack.c.h.b16 %v312
    %v1125 = vunpack.c.l.b16 %v313
    %v1126 = vunpack.c.h.b16 %v313
    %v1127 = vunpack.c.l.b16 %v314
    %v1128 = vunpack.c.h.b16 %v314
    %v1129 = vunpack.c.l.b16 %v315
    %v1130 = vunpack.c.h.b16 %v315
    %v1131 = vunpack.c.l.b16 %v316
    %v1132 = vunpack.c.h.b16 %v316
    %v1133 = vunpack.c.l.b16 %v317
    %v1134 = vunpack.c.h.b16 %v317
    %v1135 = vunpack.c.l.b16 %v318
    %v1136 = vunpack.c.h.b16 %v318
    %v1137 = vunpack.c.l.b16 %v319
    %v1138 = vunpack.c.h.b16 %v319
    %v1139 = vunpack.c.l.b16 %v320
    %v1140 = vunpack.c.h.b16 %v320
    %v1141 = vunpack.c.l.b16 %v321
    %v1142 = vunpack.c.h.b16 %v321
    %v1143 = vunpack.c.l.b16 %v322
    %v1144 = vunpack.c.h.b16 %v322
    %v1145 = vunpack.c.l.b16 %v323
    %v1146 = vunpack.c.h.b16 %v323
    %v1147 = vunpack.c.l.b16 %v324
    %v1148 = vunpack.c.h.b16 %v324
    %v1149 = vunpack.c.l.b16 %v325
    %v1150 = vunpack.c.h.b16 %v325
    %v1151 = vunpack.c.l.b16 %v326
    %v1152 = vunpack.c.h.b16 %v326
    %v1153 = vunpack.c.l.b16 %v327
    %v1154 = vunpack.c.h.b16 %v327
    %v1155 = vunpack.c.l.b16 %v328
    %v1156 = vunpack.c.h.b16 %v328
    %v1157 = vunpack.c.l.b16 %v329
    %v1158 = vunpack.c.h.b16 %v329
    %v1159 = vunpack.c.l.b16 %v330
    %v1160 = vunpack.c.h.b16 %v330
    %v1161 = vunpack.c.l.b16 %v331
    %v1162 = vunpack.c.h.b16 %v331
    %v1163 = vunpack.c.l.b16 %v332
    %v1164 = vunpack.c.h.b16 %v332
    %v1165 = vunpack.c.l.b16 %v333
    %v1166 = vunpack.c.h.b16 %v333
    %v1167 = vunpack.c.l.b16 %v334
    %v1168 = vunpack.c.h.b16 %v334
    %v1169 = vunpack.c.l.b16 %v335
    %v1170 = vunpack.c.h.b16 %v335
    %v1171 = vunpack.c.l.b16 %v336
    %v1172 = vunpack.c.h.b16 %v336
    %v1173 = vunpack.c.l.b16 %v337
    %v1174 = vunpack.c.h.b16 %v337
    %v1175 = vunpack.c.l.b16 %v338
    %v1176 = vunpack.c.h.b16 %v338
    %v1177 = vunpack.c.l.b16 %v339
    %v1178 = vunpack.c.h.b16 %v339
    %v1179 = vunpack.c.l.b16 %v340
    %v1180 = vunpack.c.h.b16 %v340
    %v1181 = vunpack.c.l.b16 %v341
    %v1182 = vunpack.c.h.b16 %v341
    %v1183 = vunpack.c.l.b16 %v342
    %v1184 = vunpack.c.h.b16 %v342
    %v1185 = vunpack.c.l.b16 %v343
    %v1186 = vunpack.c.h.b16 %v343
    %v1187 = vunpack.c.l.b16 %v344
    %v1188 = vunpack.c.h.b16 %v344
    %v1189 = vunpack.c.l.b16 %v345
    %v1190 = vunpack.c.h.b16 %v345
    %v1191 = vunpack.c.l.b16 %v346
    %v1192 = vunpack.c.h.b16 %v346
    %v1193 = vunpack.c.l.b16 %v347
    %v1194 = vunpack.c.h.b16 %v347
    %v1195 = vunpack.c.l.b16 %v348
    %v1196 = vunpack.c.h.b16 %v348
    %v1197 = vpack.c.b16 %v689, %v685
    %v1198 = vpack.c.b16 %v690, %v686
    %v1199 = vpack.c.b16 %v691, %v687
    %v1200 = vpack.c.b16 %v692, %v688
    %v1201 = vpack.c.b16 %v697, %v693
    %v1202 = vpack.c.b16 %v698, %v694
    %v1203 = vpack.c.b16 %v699, %v695
    %v1204 = vpack.c.b16 %v700, %v696
    %v1205 = vpack.c.b16 %v705, %v701
    %v1206 = vpack.c.b16 %v706, %v702
    %v1207 = vpack.c.b16 %v707, %v703
    %v1208 = vpack.c.b16 %v708, %v704
    %v1209 = vpack.c.b16 %v713, %v709
    %v1210 = vpack.c.b16 %v714, %v710
    %v1211 = vpack.c.b16 %v715, %v711
    %v1212 = vpack.c.b16 %v716, %v712
    %v1213 = vpack.c.b16 %v721, %v717
    %v1214 = vpack.c.b16 %v722, %v718
    %v1215 = vpack.c.b16 %v723, %v719
    %v1216 = vpack.c.b16 %v724, %v720
    %v1217 = vpack.c.b16 %v729, %v725
    %v1218 = vpack.c.b16 %v730, %v726
    %v1219 = vpack.c.b16 %v731, %v727
    %v1220 = vpack.c.b16 %v732, %v728
    %v1221 = vpack.c.b16 %v737, %v733
    %v1222 = vpack.c.b16 %v738, %v734
    %v1223 = vpack.c.b16 %v739, %v735
    %v1224 = vpack.c.b16 %v740, %v736
    %v1225 = vpack.c.b16 %v745, %v741
    %v1226 = vpack.c.b16 %v746, %v742
    %v1227 = vpack.c.b16 %v747, %v743
    %v1228 = vpack.c.b16 %v748, %v744
    %v1229 = vpack.c.b16 %v753, %v749
    %v1230 = vpack.c.b16 %v754, %v750
    %v1231 = vpack.c.b16 %v755, %v751
    %v1232 = vpack.c.b16 %v756, %v752
    %v1233 = vpack.c.b16 %v761, %v757
    %v1234 = vpack.c.b16 %v762, %v758
    %v1235 = vpack.c.b16 %v763, %v759
    %v1236 = vpack.c.b16 %v764, %v760
    %v1237 = vpack.c.b16 %v769, %v765
    %v1238 = vpack.c.b16 %v770, %v766
    %v1239 = vpack.c.b16 %v771, %v767
    %v1240 = vpack.c.b16 %v772, %v768
    %v1241 = vpack.c.b16 %v777, %v773
    %v1242 = vpack.c.b16 %v778, %v774
    %v1243 = vpack.c.b16 %v779, %v775
    %v1244 = vpack.c.b16 %v780, %v776
    %v1245 = vpack.c.b16 %v785, %v781
    %v1246 = vpack.c.b16 %v786, %v782
    %v1247 = vpack.c.b16 %v787, %v783
    %v1248 = vpack.c.b16 %v788, %v784
    %v1249 = vpack.c.b16 %v793, %v789
    %v1250 = vpack.c.b16 %v794, %v790
    %v1251 = vpack.c.b16 %v795, %v791
    %v1252 = vpack.c.b16 %v796, %v792
    %v1253 = vpack.c.b16 %v801, %v797
    %v1254 = vpack.c.b16 %v802, %v798
    %v1255 = vpack.c.b16 %v803, %v799
    %v1256 = vpack.c.b16 %v804, %v800
    %v1257 = vpack.c.b16 %v809, %v805
    %v1258 = vpack.c.b16 %v810, %v806
    %v1259 = vpack.c.b16 %v811, %v807
    %v1260 = vpack.c.b16 %v812, %v808
    %v1261 = vpack.c.b16 %v817, %v813
    %v1262 = vpack.c.b16 %v818, %v814
    %v1263 = vpack.c.b16 %v819, %v815
    %v1264 = vpack.c.b16 %v820, %v816
    %v1265 = vpack.c.b16 %v825, %v821
    %v1266 = vpack.c.b16 %v826, %v822
    %v1267 = vpack.c.b16 %v827, %v823
    %v1268 = vpack.c.b16 %v828, %v824
    %v1269 = vpack.c.b16 %v833, %v829
    %v1270 = vpack.c.b16 %v834, %v830
    %v1271 = vpack.c.b16 %v835, %v831
    %v1272 = vpack.c.b16 %v836, %v832
    %v1273 = vpack.c.b16 %v841, %v837
    %v1274 = vpack.c.b16 %v842, %v838
    %v1275 = vpack.c.b16 %v843, %v839
    %v1276 = vpack.c.b16 %v844, %v840
    %v1277 = vpack.c.b16 %v849, %v845
    %v1278 = vpack.c.b16 %v850, %v846
    %v1279 = vpack.c.b16 %v851, %v847
    %v1280 = vpack.c.b16 %v852, %v848
    %v1281 = vpack.c.b16 %v857, %v853
    %v1282 = vpack.c.b16 %v858, %v854
    %v1283 = vpack.c.b16 %v859, %v855
    %v1284 = vpack.c.b16 %v860, %v856
    %v1285 = vpack.c.b16 %v865, %v861
    %v1286 = vpack.c.b16 %v866, %v862
    %v1287 = vpack.c.b16 %v867, %v863
    %v1288 = vpack.c.b16 %v868, %v864
    %v1289 = vpack.c.b16 %v873, %v869
    %v1290 = vpack.c.b16 %v874, %v870
    %v1291 = vpack.c.b16 %v875, %v871
    %v1292 = vpack.c.b16 %v876, %v872
    %v1293 = vpack.c.b16 %v881, %v877
    %v1294 = vpack.c.b16 %v882, %v878
    %v1295 = vpack.c.b16 %v883, %v879
    %v1296 = vpack.c.b16 %v884, %v880
    %v1297 = vpack.c.b16 %v889, %v885
    %v1298 = vpack.c.b16 %v890, %v886
    %v1299 = vpack.c.b16 %v891, %v887
    %v1300 = vpack.c.b16 %v892, %v888
    %v1301 = vpack.c.b16 %v897, %v893
    %v1302 = vpack.c.b16 %v898, %v894
    %v1303 = vpack.c.b16 %v899, %v895
    %v1304 = vpack.c.b16 %v900, %v896
    %v1305 = vpack.c.b16 %v905, %v901
    %v1306 = vpack.c.b16 %v906, %v902
    %v1307 = vpack.c.b16 %v907, %v903
    %v1308 = vpack.c.b16 %v908, %v904
    %v1309 = vpack.c.b16 %v913, %v909
    %v1310 = vpack.c.b16 %v914, %v910
    %v1311 = vpack.c.b16 %v915, %v911
    %v1312 = vpack.c.b16 %v916, %v912
    %v1313 = vpack.c.b16 %v921, %v917
    %v1314 = vpack.c.b16 %v922, %v918
    %v1315 = vpack.c.b16 %v923, %v919
    %v1316 = vpack.c.b16 %v924, %v920
    %v1317 = vpack.c.b16 %v929, %v925
    %v1318 = vpack.c.b16 %v930, %v926
    %v1319 = vpack.c.b16 %v931, %v927
    %v1320 = vpack.c.b16 %v932, %v928
    %v1321 = vpack.c.b16 %v937, %v933
    %v1322 = vpack.c.b16 %v938, %v934
    %v1323 = vpack.c.b16 %v939, %v935
    %v1324 = vpack.c.b16 %v940, %v936
    %v1325 = vpack.c.b16 %v945, %v941
    %v1326 = vpack.c.b16 %v946, %v942
    %v1327 = vpack.c.b16 %v947, %v943
    %v1328 = vpack.c.b16 %v948, %v944
    %v1329 = vpack.c.b16 %v953, %v949
    %v1330 = vpack.c.b16 %v954, %v950
    %v1331 = vpack.c.b16 %v955, %v951
    %v1332 = vpack.c.b16 %v956, %v952
    %v1333 = vpack.c.b16 %v961, %v957
    %v1334 = vpack.c.b16 %v962, %v958
    %v1335 = vpack.c.b16 %v963, %v959
    %v1336 = vpack.c.b16 %v964, %v960
    %v1337 = vpack.c.b16 %v969, %v965
    %v1338 = vpack.c.b16 %v970, %v966
    %v1339 = vpack.c.b16 %v971, %v967
    %v1340 = vpack.c.b16 %v972, %v968
    %v1341 = vpack.c.b16 %v977, %v973
    %v1342 = vpack.c.b16 %v978, %v974
    %v1343 = vpack.c.b16 %v979, %v975
    %v1344 = vpack.c.b16 %v980, %v976
    %v1345 = vpack.c.b16 %v985, %v981
    %v1346 = vpack.c.b16 %v986, %v982
    %v1347 = vpack.c.b16 %v987, %v983
    %v1348 = vpack.c.b16 %v988, %v984
    %v1349 = vpack.c.b16 %v993, %v989
    %v1350 = vpack.c.b16 %v994, %v990
    %v1351 = vpack.c.b16 %v995, %v991
    %v1352 = vpack.c.b16 %v996, %v992
    %v1353 = vpack.c.b16 %v1001, %v997
    %v1354 = vpack.c.b16 %v1002, %v998
    %v1355 = vpack.c.b16 %v1003, %v999
    %v1356 = vpack.c.b16 %v1004, %v1000
    %v1357 = vpack.c.b16 %v1009, %v1005
    %v1358 = vpack.c.b16 %v1010, %v1006
    %v1359 = vpack.c.b16 %v1011, %v1007
    %v1360 = vpack.c.b16 %v1012, %v1008
    %v1361 = vpack.c.b16 %v1017, %v1013
    %v1362 = vpack.c.b16 %v1018, %v1014
    %v1363 = vpack.c.b16 %v1019, %v1015
    %v1364 = vpack.c.b16 %v1020, %v1016
    %v1365 = vpack.c.b16 %v1025, %v1021
    %v1366 = vpack.c.b16 %v1026, %v1022
    %v1367 = vpack.c.b16 %v1027, %v1023
    %v1368 = vpack.c.b16 %v1028, %v1024
    %v1369 = vpack.c.b16 %v1033, %v1029
    %v1370 = vpack.c.b16 %v1034, %v1030
    %v1371 = vpack.c.b16 %v1035, %v1031
    %v1372 = vpack.c.b16 %v1036, %v1032
    %v1373 = vpack.c.b16 %v1041, %v1037
    %v1374 = vpack.c.b16 %v1042, %v1038
    %v1375 = vpack.c.b16 %v1043, %v1039
    %v1376 = vpack.c.b16 %v1044, %v1040
    %v1377 = vpack.c.b16 %v1049, %v1045
    %v1378 = vpack.c.b16 %v1050, %v1046
    %v1379 = vpack.c.b16 %v1051, %v1047
    %v1380 = vpack.c.b16 %v1052, %v1048
    %v1381 = vpack.c.b16 %v1057, %v1053
    %v1382 = vpack.c.b16 %v1058, %v1054
    %v1383 = vpack.c.b16 %v1059, %v1055
    %v1384 = vpack.c.b16 %v1060, %v1056
    %v1385 = vpack.c.b16 %v1065, %v1061
    %v1386 = vpack.c.b16 %v1066, %v1062
    %v1387 = vpack.c.b16 %v1067, %v1063
    %v1388 = vpack.c.b16 %v1068, %v1064
    %v1389 = vpack.c.b16 %v1073, %v1069
    %v1390 = vpack.c.b16 %v1074, %v1070
    %v1391 = vpack.c.b16 %v1075, %v1071
    %v1392 = vpack.c.b16 %v1076, %v1072
    %v1393 = vpack.c.b16 %v1081, %v1077
    %v1394 = vpack.c.b16 %v1082, %v1078
    %v1395 = vpack.c.b16 %v1083, %v1079
    %v1396 = vpack.c.b16 %v1084, %v1080
    %v1397 = vpack.c.b16 %v1089, %v1085
    %v1398 = vpack.c.b16 %v1090, %v1086
    %v1399 = vpack.c.b16 %v1091, %v1087
    %v1400 = vpack.c.b16 %v1092, %v1088
    %v1401 = vpack.c.b16 %v1097, %v1093
    %v1402 = vpack.c.b16 %v1098, %v1094
    %v1403 = vpack.c.b16 %v1099, %v1095
    %v1404 = vpack.c.b16 %v1100, %v1096
    %v1405 = vpack.c.b16 %v1105, %v1101
    %v1406 = vpack.c.b16 %v1106, %v1102
    %v1407 = vpack.c.b16 %v1107, %v1103
    %v1408 = vpack.c.b16 %v1108, %v1104
    %v1409 = vpack.c.b16 %v1113, %v1109
    %v1410 = vpack.c.b16 %v1114, %v1110
    %v1411 = vpack.c.b16 %v1115, %v1111
    %v1412 = vpack.c.b16 %v1116, %v1112
    %v1413 = vpack.c.b16 %v1121, %v1117
    %v1414 = vpack.c.b16 %v1122, %v1118
    %v1415 = vpack.c.b16 %v1123, %v1119
    %v1416 = vpack.c.b16 %v1124, %v1120
    %v1417 = vpack.c.b16 %v1129, %v1125
    %v1418 = vpack.c.b16 %v1130, %v1126
    %v1419 = vpack.c.b16 %v1131, %v1127
    %v1420 = vpack.c.b16 %v1132, %v1128
    %v1421 = vpack.c.b16 %v1137, %v1133
    %v1422 = vpack.c.b16 %v1138, %v1134
    %v1423 = vpack.c.b16 %v1139, %v1135
    %v1424 = vpack.c.b16 %v1140, %v1136
    %v1425 = vpack.c.b16 %v1145, %v1141
    %v1426 = vpack.c.b16 %v1146, %v1142
    %v1427 = vpack.c.b16 %v1147, %v1143
    %v1428 = vpack.c.b16 %v1148, %v1144
    %v1429 = vpack.c.b16 %v1153, %v1149
    %v1430 = vpack.c.b16 %v1154, %v1150
    %v1431 = vpack.c.b16 %v1155, %v1151
    %v1432 = vpack.c.b16 %v1156, %v1152
    %v1433 = vpack.c.b16 %v1161, %v1157
    %v1434 = vpack.c.b16 %v1162, %v1158
    %v1435 = vpack.c.b16 %v1163, %v1159
    %v1436 = vpack.c.b16 %v1164, %v1160
    %v1437 = vpack.c.b16 %v1169, %v1165
    %v1438 = vpack.c.b16 %v1170, %v1166
    %v1439 = vpack.c.b16 %v1171, %v1167
    %v1440 = vpack.c.b16 %v1172, %v1168
    %v1441 = vpack.c.b16 %v1177, %v1173
    %v1442 = vpack.c.b16 %v1178, %v1174
    %v1443 = vpack.c.b16 %v1179, %v1175
    %v1444 = vpack.c.b16 %v1180, %v1176
    %v1445 = vpack.c.b16 %v1185, %v1181
    %v1446 = vpack.c.b16 %v1186, %v1182
    %v1447 = vpack.c.b16 %v1187, %v1183
    %v1448 = vpack.c.b16 %v1188, %v1184
    %v1449 = vpack.c.b16 %v1193, %v1189
    %v1450 = vpack.c.b16 %v1194, %v1190
    %v1451 = vpack.c.b16 %v1195, %v1191
    %v1452 = vpack.c.b16 %v1196, %v1192
    %1709 = vmatprep.subr.bf16.mxu0 %v1226
    %1710 = vmatpush1.bf16.msra.mxu0 %v1225
    %1711 = vmatprep.subr.bf16.mxu0 %v1222
    %1712 = vmatpush1.bf16.msra.mxu0 %v1221
    %1713 = vmatprep.subr.bf16.mxu0 %v1218
    %1714 = vmatpush1.bf16.msra.mxu0 %v1217
    %1715 = vmatprep.subr.bf16.mxu0 %v1214
    %1716 = vmatpush1.bf16.msra.mxu0 %v1213
    %1717 = vmatprep.subr.bf16.mxu0 %v1210
    %1718 = vmatpush1.bf16.msra.mxu0 %v1209
    %1719 = vmatprep.subr.bf16.mxu0 %v1206
    %1720 = vmatpush1.bf16.msra.mxu0 %v1205
    %1721 = vmatprep.subr.bf16.mxu0 %v1202
    %1722 = vmatpush1.bf16.msra.mxu0 %v1201
    %1723 = vmatprep.subr.bf16.mxu0 %v1198
    %1724 = vmatpush1.bf16.msra.mxu0 %v1197
    %1725 = vmatprep.subr.bf16.mxu0 %v1258
    %1726 = vmatpush2.bf16.msra.mxu0 %v1257
    %1727 = vmatprep.subr.bf16.mxu0 %v1254
    %1728 = vmatpush2.bf16.msra.mxu0 %v1253
    %1729 = vmatprep.subr.bf16.mxu0 %v1250
    %1730 = vmatpush2.bf16.msra.mxu0 %v1249
    %1731 = vmatprep.subr.bf16.mxu0 %v1246
    %1732 = vmatpush2.bf16.msra.mxu0 %v1245
    %1733 = vmatprep.subr.bf16.mxu0 %v1242
    %1734 = vmatpush2.bf16.msra.mxu0 %v1241
    %1735 = vmatprep.subr.bf16.mxu0 %v1238
    %1736 = vmatpush2.bf16.msra.mxu0 %v1237
    %1737 = vmatprep.subr.bf16.mxu0 %v1234
    %1738 = vmatpush2.bf16.msra.mxu0 %v1233
    %1739 = vmatprep.subr.bf16.mxu0 %v1230
    %1740 = vmatpush2.bf16.msra.mxu0 %v1229
    %1741 = vmatprep.mubr.bf16.mxu0 %v409
    %1742 = vmatmul.mubr.bf16.gmra.mxu0 %v395
    %v1743 = vpop.f32.mrf.mxu0
    %v1744 = vadd.f32 %v354, %v1743
    %v1745 = vpop.f32.mrf.mxu0
    %v1746 = vadd.f32 %v358, %v1745
    %v1747 = vpop.f32.mrf.mxu0
    %v1748 = vpop.f32.mrf.mxu0
    %1749 = vdwg.mxu0
    %1750 = vmatprep.subr.bf16.mxu0 %v1290
    %1751 = vmatpush1.bf16.msra.mxu0 %v1289
    %1752 = vmatprep.subr.bf16.mxu0 %v1286
    %1753 = vmatpush1.bf16.msra.mxu0 %v1285
    %1754 = vmatprep.subr.bf16.mxu0 %v1282
    %1755 = vmatpush1.bf16.msra.mxu0 %v1281
    %1756 = vmatprep.subr.bf16.mxu0 %v1278
    %1757 = vmatpush1.bf16.msra.mxu0 %v1277
    %1758 = vmatprep.subr.bf16.mxu0 %v1274
    %1759 = vmatpush1.bf16.msra.mxu0 %v1273
    %1760 = vmatprep.subr.bf16.mxu0 %v1270
    %1761 = vmatpush1.bf16.msra.mxu0 %v1269
    %1762 = vmatprep.subr.bf16.mxu0 %v1266
    %1763 = vmatpush1.bf16.msra.mxu0 %v1265
    %1764 = vmatprep.subr.bf16.mxu0 %v1262
    %1765 = vmatpush1.bf16.msra.mxu0 %v1261
    %1766 = vmatprep.subr.bf16.mxu0 %v1322
    %1767 = vmatpush2.bf16.msra.mxu0 %v1321
    %1768 = vmatprep.subr.bf16.mxu0 %v1318
    %1769 = vmatpush2.bf16.msra.mxu0 %v1317
    %1770 = vmatprep.subr.bf16.mxu0 %v1314
    %1771 = vmatpush2.bf16.msra.mxu0 %v1313
    %1772 = vmatprep.subr.bf16.mxu0 %v1310
    %1773 = vmatpush2.bf16.msra.mxu0 %v1309
    %1774 = vmatprep.subr.bf16.mxu0 %v1306
    %1775 = vmatpush2.bf16.msra.mxu0 %v1305
    %1776 = vmatprep.subr.bf16.mxu0 %v1302
    %1777 = vmatpush2.bf16.msra.mxu0 %v1301
    %1778 = vmatprep.subr.bf16.mxu0 %v1298
    %1779 = vmatpush2.bf16.msra.mxu0 %v1297
    %1780 = vmatprep.subr.bf16.mxu0 %v1294
    %1781 = vmatpush2.bf16.msra.mxu0 %v1293
    %1782 = vmatprep.mubr.bf16.mxu0 %v419
    %1783 = vmatmul.mubr.bf16.gmra.mxu0 %v417
    %v1784 = vpop.f32.mrf.mxu0
    %v1785 = vadd.f32 %v1744, %v1784
    %v1786 = vpop.f32.mrf.mxu0
    %v1787 = vadd.f32 %v1746, %v1786
    %v1788 = vpop.f32.mrf.mxu0
    %v1789 = vpop.f32.mrf.mxu0
    %1790 = vdwg.mxu0
    %1791 = vmatprep.subr.bf16.mxu0 %v1354
    %1792 = vmatpush1.bf16.msra.mxu0 %v1353
    %1793 = vmatprep.subr.bf16.mxu0 %v1350
    %1794 = vmatpush1.bf16.msra.mxu0 %v1349
    %1795 = vmatprep.subr.bf16.mxu0 %v1346
    %1796 = vmatpush1.bf16.msra.mxu0 %v1345
    %1797 = vmatprep.subr.bf16.mxu0 %v1342
    %1798 = vmatpush1.bf16.msra.mxu0 %v1341
    %1799 = vmatprep.subr.bf16.mxu0 %v1338
    %1800 = vmatpush1.bf16.msra.mxu0 %v1337
    %1801 = vmatprep.subr.bf16.mxu0 %v1334
    %1802 = vmatpush1.bf16.msra.mxu0 %v1333
    %1803 = vmatprep.subr.bf16.mxu0 %v1330
    %1804 = vmatpush1.bf16.msra.mxu0 %v1329
    %1805 = vmatprep.subr.bf16.mxu0 %v1326
    %1806 = vmatpush1.bf16.msra.mxu0 %v1325
    %1807 = vmatprep.subr.bf16.mxu0 %v1386
    %1808 = vmatpush2.bf16.msra.mxu0 %v1385
    %1809 = vmatprep.subr.bf16.mxu0 %v1382
    %1810 = vmatpush2.bf16.msra.mxu0 %v1381
    %1811 = vmatprep.subr.bf16.mxu0 %v1378
    %1812 = vmatpush2.bf16.msra.mxu0 %v1377
    %1813 = vmatprep.subr.bf16.mxu0 %v1374
    %1814 = vmatpush2.bf16.msra.mxu0 %v1373
    %1815 = vmatprep.subr.bf16.mxu0 %v1370
    %1816 = vmatpush2.bf16.msra.mxu0 %v1369
    %1817 = vmatprep.subr.bf16.mxu0 %v1366
    %1818 = vmatpush2.bf16.msra.mxu0 %v1365
    %1819 = vmatprep.subr.bf16.mxu0 %v1362
    %1820 = vmatpush2.bf16.msra.mxu0 %v1361
    %1821 = vmatprep.subr.bf16.mxu0 %v1358
    %1822 = vmatpush2.bf16.msra.mxu0 %v1357
    %1823 = vmatprep.mubr.bf16.mxu0 %v416
    %1824 = vmatmul.mubr.bf16.gmra.mxu0 %v402
    %v1825 = vpop.f32.mrf.mxu0
    %v1826 = vadd.f32 %v1785, %v1825
    %v1827 = vpop.f32.mrf.mxu0
    %v1828 = vadd.f32 %v1787, %v1827
    %v1829 = vpop.f32.mrf.mxu0
    %v1830 = vpop.f32.mrf.mxu0
    %1831 = vdwg.mxu0
    %1832 = vmatprep.subr.bf16.mxu0 %v1418
    %1833 = vmatpush1.bf16.msra.mxu0 %v1417
    %1834 = vmatprep.subr.bf16.mxu0 %v1414
    %1835 = vmatpush1.bf16.msra.mxu0 %v1413
    %1836 = vmatprep.subr.bf16.mxu0 %v1410
    %1837 = vmatpush1.bf16.msra.mxu0 %v1409
    %1838 = vmatprep.subr.bf16.mxu0 %v1406
    %1839 = vmatpush1.bf16.msra.mxu0 %v1405
    %1840 = vmatprep.subr.bf16.mxu0 %v1402
    %1841 = vmatpush1.bf16.msra.mxu0 %v1401
    %1842 = vmatprep.subr.bf16.mxu0 %v1398
    %1843 = vmatpush1.bf16.msra.mxu0 %v1397
    %1844 = vmatprep.subr.bf16.mxu0 %v1394
    %1845 = vmatpush1.bf16.msra.mxu0 %v1393
    %1846 = vmatprep.subr.bf16.mxu0 %v1390
    %1847 = vmatpush1.bf16.msra.mxu0 %v1389
    %1848 = vmatprep.subr.bf16.mxu0 %v1450
    %1849 = vmatpush2.bf16.msra.mxu0 %v1449
    %1850 = vmatprep.subr.bf16.mxu0 %v1446
    %1851 = vmatpush2.bf16.msra.mxu0 %v1445
    %1852 = vmatprep.subr.bf16.mxu0 %v1442
    %1853 = vmatpush2.bf16.msra.mxu0 %v1441
    %1854 = vmatprep.subr.bf16.mxu0 %v1438
    %1855 = vmatpush2.bf16.msra.mxu0 %v1437
    %1856 = vmatprep.subr.bf16.mxu0 %v1434
    %1857 = vmatpush2.bf16.msra.mxu0 %v1433
    %1858 = vmatprep.subr.bf16.mxu0 %v1430
    %1859 = vmatpush2.bf16.msra.mxu0 %v1429
    %1860 = vmatprep.subr.bf16.mxu0 %v1426
    %1861 = vmatpush2.bf16.msra.mxu0 %v1425
    %1862 = vmatprep.subr.bf16.mxu0 %v1422
    %1863 = vmatpush2.bf16.msra.mxu0 %v1421
    %1864 = vmatprep.mubr.bf16.mxu0 %v420
    %1865 = vmatmul.mubr.bf16.gmra.mxu0 %v418
    %v1866 = vpop.f32.mrf.mxu0
    %v1867 = vadd.f32 %v1826, %v1866
    %v1868 = vpop.f32.mrf.mxu0
    %v1869 = vadd.f32 %v1828, %v1868
    %v1870 = vpop.f32.mrf.mxu0
    %v1871 = vpop.f32.mrf.mxu0
    %1872 = vdwg.mxu0
    %1873 = vmatprep.subr.bf16.mxu0 %v1228
    %1874 = vmatpush1.bf16.msra.mxu0 %v1227
    %1875 = vmatprep.subr.bf16.mxu0 %v1224
    %1876 = vmatpush1.bf16.msra.mxu0 %v1223
    %1877 = vmatprep.subr.bf16.mxu0 %v1220
    %1878 = vmatpush1.bf16.msra.mxu0 %v1219
    %1879 = vmatprep.subr.bf16.mxu0 %v1216
    %1880 = vmatpush1.bf16.msra.mxu0 %v1215
    %1881 = vmatprep.subr.bf16.mxu0 %v1212
    %1882 = vmatpush1.bf16.msra.mxu0 %v1211
    %1883 = vmatprep.subr.bf16.mxu0 %v1208
    %1884 = vmatpush1.bf16.msra.mxu0 %v1207
    %1885 = vmatprep.subr.bf16.mxu0 %v1204
    %1886 = vmatpush1.bf16.msra.mxu0 %v1203
    %1887 = vmatprep.subr.bf16.mxu0 %v1200
    %1888 = vmatpush1.bf16.msra.mxu0 %v1199
    %1889 = vmatprep.subr.bf16.mxu0 %v1260
    %1890 = vmatpush2.bf16.msra.mxu0 %v1259
    %1891 = vmatprep.subr.bf16.mxu0 %v1256
    %1892 = vmatpush2.bf16.msra.mxu0 %v1255
    %1893 = vmatprep.subr.bf16.mxu0 %v1252
    %1894 = vmatpush2.bf16.msra.mxu0 %v1251
    %1895 = vmatprep.subr.bf16.mxu0 %v1248
    %1896 = vmatpush2.bf16.msra.mxu0 %v1247
    %1897 = vmatprep.subr.bf16.mxu0 %v1244
    %1898 = vmatpush2.bf16.msra.mxu0 %v1243
    %1899 = vmatprep.subr.bf16.mxu0 %v1240
    %1900 = vmatpush2.bf16.msra.mxu0 %v1239
    %1901 = vmatprep.subr.bf16.mxu0 %v1236
    %1902 = vmatpush2.bf16.msra.mxu0 %v1235
    %1903 = vmatprep.subr.bf16.mxu0 %v1232
    %1904 = vmatpush2.bf16.msra.mxu0 %v1231
    %1905 = vmatprep.mubr.bf16.mxu0 %v409
    %1906 = vmatmul.mubr.bf16.gmra.mxu0 %v395
    %v1907 = vpop.f32.mrf.mxu0
    %v1908 = vadd.f32 %v362, %v1907
    %v1909 = vpop.f32.mrf.mxu0
    %v1910 = vadd.f32 %v366, %v1909
    %v1911 = vpop.f32.mrf.mxu0
    %v1912 = vpop.f32.mrf.mxu0
    %1913 = vdwg.mxu0
    %1914 = vmatprep.subr.bf16.mxu0 %v1292
    %1915 = vmatpush1.bf16.msra.mxu0 %v1291
    %1916 = vmatprep.subr.bf16.mxu0 %v1288
    %1917 = vmatpush1.bf16.msra.mxu0 %v1287
    %1918 = vmatprep.subr.bf16.mxu0 %v1284
    %1919 = vmatpush1.bf16.msra.mxu0 %v1283
    %1920 = vmatprep.subr.bf16.mxu0 %v1280
    %1921 = vmatpush1.bf16.msra.mxu0 %v1279
    %1922 = vmatprep.subr.bf16.mxu0 %v1276
    %1923 = vmatpush1.bf16.msra.mxu0 %v1275
    %1924 = vmatprep.subr.bf16.mxu0 %v1272
    %1925 = vmatpush1.bf16.msra.mxu0 %v1271
    %1926 = vmatprep.subr.bf16.mxu0 %v1268
    %1927 = vmatpush1.bf16.msra.mxu0 %v1267
    %1928 = vmatprep.subr.bf16.mxu0 %v1264
    %1929 = vmatpush1.bf16.msra.mxu0 %v1263
    %1930 = vmatprep.subr.bf16.mxu0 %v1324
    %1931 = vmatpush2.bf16.msra.mxu0 %v1323
    %1932 = vmatprep.subr.bf16.mxu0 %v1320
    %1933 = vmatpush2.bf16.msra.mxu0 %v1319
    %1934 = vmatprep.subr.bf16.mxu0 %v1316
    %1935 = vmatpush2.bf16.msra.mxu0 %v1315
    %1936 = vmatprep.subr.bf16.mxu0 %v1312
    %1937 = vmatpush2.bf16.msra.mxu0 %v1311
    %1938 = vmatprep.subr.bf16.mxu0 %v1308
    %1939 = vmatpush2.bf16.msra.mxu0 %v1307
    %1940 = vmatprep.subr.bf16.mxu0 %v1304
    %1941 = vmatpush2.bf16.msra.mxu0 %v1303
    %1942 = vmatprep.subr.bf16.mxu0 %v1300
    %1943 = vmatpush2.bf16.msra.mxu0 %v1299
    %1944 = vmatprep.subr.bf16.mxu0 %v1296
    %1945 = vmatpush2.bf16.msra.mxu0 %v1295
    %1946 = vmatprep.mubr.bf16.mxu0 %v419
    %1947 = vmatmul.mubr.bf16.gmra.mxu0 %v417
    %v1948 = vpop.f32.mrf.mxu0
    %v1949 = vadd.f32 %v1908, %v1948
    %v1950 = vpop.f32.mrf.mxu0
    %v1951 = vadd.f32 %v1910, %v1950
    %v1952 = vpop.f32.mrf.mxu0
    %v1953 = vpop.f32.mrf.mxu0
    %1954 = vdwg.mxu0
    %1955 = vmatprep.subr.bf16.mxu0 %v1356
    %1956 = vmatpush1.bf16.msra.mxu0 %v1355
    %1957 = vmatprep.subr.bf16.mxu0 %v1352
    %1958 = vmatpush1.bf16.msra.mxu0 %v1351
    %1959 = vmatprep.subr.bf16.mxu0 %v1348
    %1960 = vmatpush1.bf16.msra.mxu0 %v1347
    %1961 = vmatprep.subr.bf16.mxu0 %v1344
    %1962 = vmatpush1.bf16.msra.mxu0 %v1343
    %1963 = vmatprep.subr.bf16.mxu0 %v1340
    %1964 = vmatpush1.bf16.msra.mxu0 %v1339
    %1965 = vmatprep.subr.bf16.mxu0 %v1336
    %1966 = vmatpush1.bf16.msra.mxu0 %v1335
    %1967 = vmatprep.subr.bf16.mxu0 %v1332
    %1968 = vmatpush1.bf16.msra.mxu0 %v1331
    %1969 = vmatprep.subr.bf16.mxu0 %v1328
    %1970 = vmatpush1.bf16.msra.mxu0 %v1327
    %1971 = vmatprep.subr.bf16.mxu0 %v1388
    %1972 = vmatpush2.bf16.msra.mxu0 %v1387
    %1973 = vmatprep.subr.bf16.mxu0 %v1384
    %1974 = vmatpush2.bf16.msra.mxu0 %v1383
    %1975 = vmatprep.subr.bf16.mxu0 %v1380
    %1976 = vmatpush2.bf16.msra.mxu0 %v1379
    %1977 = vmatprep.subr.bf16.mxu0 %v1376
    %1978 = vmatpush2.bf16.msra.mxu0 %v1375
    %1979 = vmatprep.subr.bf16.mxu0 %v1372
    %1980 = vmatpush2.bf16.msra.mxu0 %v1371
    %1981 = vmatprep.subr.bf16.mxu0 %v1368
    %1982 = vmatpush2.bf16.msra.mxu0 %v1367
    %1983 = vmatprep.subr.bf16.mxu0 %v1364
    %1984 = vmatpush2.bf16.msra.mxu0 %v1363
    %1985 = vmatprep.subr.bf16.mxu0 %v1360
    %1986 = vmatpush2.bf16.msra.mxu0 %v1359
    %1987 = vmatprep.mubr.bf16.mxu0 %v416
    %1988 = vmatmul.mubr.bf16.gmra.mxu0 %v402
    %v1989 = vpop.f32.mrf.mxu0
    %v1990 = vadd.f32 %v1949, %v1989
    %v1991 = vpop.f32.mrf.mxu0
    %v1992 = vadd.f32 %v1951, %v1991
    %v1993 = vpop.f32.mrf.mxu0
    %v1994 = vpop.f32.mrf.mxu0
    %1995 = vdwg.mxu0
    %1996 = vmatprep.subr.bf16.mxu0 %v1420
    %1997 = vmatpush1.bf16.msra.mxu0 %v1419
    %1998 = vmatprep.subr.bf16.mxu0 %v1416
    %1999 = vmatpush1.bf16.msra.mxu0 %v1415
    %2000 = vmatprep.subr.bf16.mxu0 %v1412
    %2001 = vmatpush1.bf16.msra.mxu0 %v1411
    %2002 = vmatprep.subr.bf16.mxu0 %v1408
    %2003 = vmatpush1.bf16.msra.mxu0 %v1407
    %2004 = vmatprep.subr.bf16.mxu0 %v1404
    %2005 = vmatpush1.bf16.msra.mxu0 %v1403
    %2006 = vmatprep.subr.bf16.mxu0 %v1400
    %2007 = vmatpush1.bf16.msra.mxu0 %v1399
    %2008 = vmatprep.subr.bf16.mxu0 %v1396
    %2009 = vmatpush1.bf16.msra.mxu0 %v1395
    %2010 = vmatprep.subr.bf16.mxu0 %v1392
    %2011 = vmatpush1.bf16.msra.mxu0 %v1391
    %2012 = vmatprep.subr.bf16.mxu0 %v1452
    %2013 = vmatpush2.bf16.msra.mxu0 %v1451
    %2014 = vmatprep.subr.bf16.mxu0 %v1448
    %2015 = vmatpush2.bf16.msra.mxu0 %v1447
    %2016 = vmatprep.subr.bf16.mxu0 %v1444
    %2017 = vmatpush2.bf16.msra.mxu0 %v1443
    %2018 = vmatprep.subr.bf16.mxu0 %v1440
    %2019 = vmatpush2.bf16.msra.mxu0 %v1439
    %2020 = vmatprep.subr.bf16.mxu0 %v1436
    %2021 = vmatpush2.bf16.msra.mxu0 %v1435
    %2022 = vmatprep.subr.bf16.mxu0 %v1432
    %2023 = vmatpush2.bf16.msra.mxu0 %v1431
    %2024 = vmatprep.subr.bf16.mxu0 %v1428
    %2025 = vmatpush2.bf16.msra.mxu0 %v1427
    %2026 = vmatprep.subr.bf16.mxu0 %v1424
    %2027 = vmatpush2.bf16.msra.mxu0 %v1423
    %2028 = vmatprep.mubr.bf16.mxu0 %v420
    %2029 = vmatmul.mubr.bf16.gmra.mxu0 %v418
    %v2030 = vpop.f32.mrf.mxu0
    %v2031 = vadd.f32 %v1990, %v2030
    %v2032 = vpop.f32.mrf.mxu0
    %v2033 = vadd.f32 %v1992, %v2032
    %v2034 = vpop.f32.mrf.mxu0
    %v2035 = vpop.f32.mrf.mxu0
    %2036 = vdwg.mxu0
    %vm2037 = vcmp.gt.f32.partialorder %v1867, 0.0
    %vm2038 = vcmp.gt.f32.partialorder %v1869, 0.0
    %vm2039 = vcmp.gt.f32.partialorder %v2031, 0.0
    %vm2040 = vcmp.gt.f32.partialorder %v2033, 0.0
    %v2041 = vmul.f32 %v1867, 0.2
    %v2042 = vmul.f32 %v1869, 0.2
    %v2043 = vmul.f32 %v2031, 0.2
    %v2044 = vmul.f32 %v2033, 0.2
    %v2045 = vsel %vm2037, %v1867, %v2041
    %v2046 = vsel %vm2038, %v1869, %v2042
    %v2047 = vsel %vm2039, %v2031, %v2043
    %v2048 = vsel %vm2040, %v2033, %v2044
    %v2049 = vpack.c.bf16 %v2045, %v2045
    %v2050 = vpack.c.bf16 %v2046, %v2046
    %v2051 = vpack.c.bf16 %v2047, %v2047
    %v2052 = vpack.c.bf16 %v2048, %v2048
    %v2053 = vld [vmem:[#allocation8] sm:$0xff]
    %v2054 = vld [vmem:[#allocation8 + $0x8] sm:$0xff]
    %v2055 = vld [vmem:[#allocation8 + $0x10] sm:$0xff]
    %v2056 = vld [vmem:[#allocation8 + $0x18] sm:$0xff]
    %v2057 = vld [vmem:[#allocation8 + $0x20] sm:$0xff]
    %v2058 = vld [vmem:[#allocation8 + $0x28] sm:$0xff]
    %v2059 = vld [vmem:[#allocation8 + $0x30] sm:$0xff]
    %v2060 = vld [vmem:[#allocation8 + $0x38] sm:$0xff]
    %v2061 = vld [vmem:[#allocation8 + $0x40] sm:$0xff]
    %v2062 = vld [vmem:[#allocation8 + $0x48] sm:$0xff]
    %v2063 = vld [vmem:[#allocation8 + $0x50] sm:$0xff]
    %v2064 = vld [vmem:[#allocation8 + $0x58] sm:$0xff]
    %v2065 = vld [vmem:[#allocation8 + $0x60] sm:$0xff]
    %v2066 = vld [vmem:[#allocation8 + $0x68] sm:$0xff]
    %v2067 = vld [vmem:[#allocation8 + $0x70] sm:$0xff]
    %v2068 = vld [vmem:[#allocation8 + $0x78] sm:$0xff]
    %v2069 = vld [vmem:[#allocation8 + $0x80] sm:$0xff]
    %v2070 = vld [vmem:[#allocation8 + $0x88] sm:$0xff]
    %v2071 = vld [vmem:[#allocation8 + $0x90] sm:$0xff]
    %v2072 = vld [vmem:[#allocation8 + $0x98] sm:$0xff]
    %v2073 = vld [vmem:[#allocation8 + $0xa0] sm:$0xff]
    %v2074 = vld [vmem:[#allocation8 + $0xa8] sm:$0xff]
    %v2075 = vld [vmem:[#allocation8 + $0xb0] sm:$0xff]
    %v2076 = vld [vmem:[#allocation8 + $0xb8] sm:$0xff]
    %v2077 = vld [vmem:[#allocation8 + $0xc0] sm:$0xff]
    %v2078 = vld [vmem:[#allocation8 + $0xc8] sm:$0xff]
    %v2079 = vld [vmem:[#allocation8 + $0xd0] sm:$0xff]
    %v2080 = vld [vmem:[#allocation8 + $0xd8] sm:$0xff]
    %v2081 = vld [vmem:[#allocation8 + $0xe0] sm:$0xff]
    %v2082 = vld [vmem:[#allocation8 + $0xe8] sm:$0xff]
    %v2083 = vld [vmem:[#allocation8 + $0xf0] sm:$0xff]
    %v2084 = vld [vmem:[#allocation8 + $0xf8] sm:$0xff]
    %v2085 = vld [vmem:[#allocation8 + $0x100] sm:$0xff]
    %v2086 = vld [vmem:[#allocation8 + $0x108] sm:$0xff]
    %v2087 = vld [vmem:[#allocation8 + $0x110] sm:$0xff]
    %v2088 = vld [vmem:[#allocation8 + $0x118] sm:$0xff]
    %v2089 = vld [vmem:[#allocation8 + $0x120] sm:$0xff]
    %v2090 = vld [vmem:[#allocation8 + $0x128] sm:$0xff]
    %v2091 = vld [vmem:[#allocation8 + $0x130] sm:$0xff]
    %v2092 = vld [vmem:[#allocation8 + $0x138] sm:$0xff]
    %v2093 = vld [vmem:[#allocation8 + $0x140] sm:$0xff]
    %v2094 = vld [vmem:[#allocation8 + $0x148] sm:$0xff]
    %v2095 = vld [vmem:[#allocation8 + $0x150] sm:$0xff]
    %v2096 = vld [vmem:[#allocation8 + $0x158] sm:$0xff]
    %v2097 = vld [vmem:[#allocation8 + $0x160] sm:$0xff]
    %v2098 = vld [vmem:[#allocation8 + $0x168] sm:$0xff]
    %v2099 = vld [vmem:[#allocation8 + $0x170] sm:$0xff]
    %v2100 = vld [vmem:[#allocation8 + $0x178] sm:$0xff]
    %v2101 = vld [vmem:[#allocation8 + $0x180] sm:$0xff]
    %v2102 = vld [vmem:[#allocation8 + $0x188] sm:$0xff]
    %v2103 = vld [vmem:[#allocation8 + $0x190] sm:$0xff]
    %v2104 = vld [vmem:[#allocation8 + $0x198] sm:$0xff]
    %v2105 = vld [vmem:[#allocation8 + $0x1a0] sm:$0xff]
    %v2106 = vld [vmem:[#allocation8 + $0x1a8] sm:$0xff]
    %v2107 = vld [vmem:[#allocation8 + $0x1b0] sm:$0xff]
    %v2108 = vld [vmem:[#allocation8 + $0x1b8] sm:$0xff]
    %v2109 = vld [vmem:[#allocation8 + $0x1c0] sm:$0xff]
    %v2110 = vld [vmem:[#allocation8 + $0x1c8] sm:$0xff]
    %v2111 = vld [vmem:[#allocation8 + $0x1d0] sm:$0xff]
    %v2112 = vld [vmem:[#allocation8 + $0x1d8] sm:$0xff]
    %v2113 = vld [vmem:[#allocation8 + $0x1e0] sm:$0xff]
    %v2114 = vld [vmem:[#allocation8 + $0x1e8] sm:$0xff]
    %v2115 = vld [vmem:[#allocation8 + $0x1f0] sm:$0xff]
    %v2116 = vld [vmem:[#allocation8 + $0x1f8] sm:$0xff]
    %v2117 = vld [vmem:[%s4] sm:$0x3]
    %v2119 = vlaneseq
    %v2120 = vshrl.u32 %v2119, 7
    %v2121 = vsub.s32 0, %v2120
    %v2122 = vrot.slane %v2117, %v2121
    %v2123 = vlaneseq
    %v2124 = vshrl.u32 %v2123, 7
    %v2125 = vsub.s32 1, %v2124
    %v2126 = vrot.slane %v2117, %v2125
    %v2193 = vunpack.c.l.b16 %v2053
    %v2194 = vunpack.c.h.b16 %v2053
    %v2195 = vunpack.c.l.b16 %v2054
    %v2196 = vunpack.c.h.b16 %v2054
    %v2197 = vunpack.c.l.b16 %v2055
    %v2198 = vunpack.c.h.b16 %v2055
    %v2199 = vunpack.c.l.b16 %v2056
    %v2200 = vunpack.c.h.b16 %v2056
    %v2201 = vunpack.c.l.b16 %v2057
    %v2202 = vunpack.c.h.b16 %v2057
    %v2203 = vunpack.c.l.b16 %v2058
    %v2204 = vunpack.c.h.b16 %v2058
    %v2205 = vunpack.c.l.b16 %v2059
    %v2206 = vunpack.c.h.b16 %v2059
    %v2207 = vunpack.c.l.b16 %v2060
    %v2208 = vunpack.c.h.b16 %v2060
    %v2209 = vunpack.c.l.b16 %v2061
    %v2210 = vunpack.c.h.b16 %v2061
    %v2211 = vunpack.c.l.b16 %v2062
    %v2212 = vunpack.c.h.b16 %v2062
    %v2213 = vunpack.c.l.b16 %v2063
    %v2214 = vunpack.c.h.b16 %v2063
    %v2215 = vunpack.c.l.b16 %v2064
    %v2216 = vunpack.c.h.b16 %v2064
    %v2217 = vunpack.c.l.b16 %v2065
    %v2218 = vunpack.c.h.b16 %v2065
    %v2219 = vunpack.c.l.b16 %v2066
    %v2220 = vunpack.c.h.b16 %v2066
    %v2221 = vunpack.c.l.b16 %v2067
    %v2222 = vunpack.c.h.b16 %v2067
    %v2223 = vunpack.c.l.b16 %v2068
    %v2224 = vunpack.c.h.b16 %v2068
    %v2225 = vunpack.c.l.b16 %v2069
    %v2226 = vunpack.c.h.b16 %v2069
    %v2227 = vunpack.c.l.b16 %v2070
    %v2228 = vunpack.c.h.b16 %v2070
    %v2229 = vunpack.c.l.b16 %v2071
    %v2230 = vunpack.c.h.b16 %v2071
    %v2231 = vunpack.c.l.b16 %v2072
    %v2232 = vunpack.c.h.b16 %v2072
    %v2233 = vunpack.c.l.b16 %v2073
    %v2234 = vunpack.c.h.b16 %v2073
    %v2235 = vunpack.c.l.b16 %v2074
    %v2236 = vunpack.c.h.b16 %v2074
    %v2237 = vunpack.c.l.b16 %v2075
    %v2238 = vunpack.c.h.b16 %v2075
    %v2239 = vunpack.c.l.b16 %v2076
    %v2240 = vunpack.c.h.b16 %v2076
    %v2241 = vunpack.c.l.b16 %v2077
    %v2242 = vunpack.c.h.b16 %v2077
    %v2243 = vunpack.c.l.b16 %v2078
    %v2244 = vunpack.c.h.b16 %v2078
    %v2245 = vunpack.c.l.b16 %v2079
    %v2246 = vunpack.c.h.b16 %v2079
    %v2247 = vunpack.c.l.b16 %v2080
    %v2248 = vunpack.c.h.b16 %v2080
    %v2249 = vunpack.c.l.b16 %v2081
    %v2250 = vunpack.c.h.b16 %v2081
    %v2251 = vunpack.c.l.b16 %v2082
    %v2252 = vunpack.c.h.b16 %v2082
    %v2253 = vunpack.c.l.b16 %v2083
    %v2254 = vunpack.c.h.b16 %v2083
    %v2255 = vunpack.c.l.b16 %v2084
    %v2256 = vunpack.c.h.b16 %v2084
    %v2257 = vunpack.c.l.b16 %v2085
    %v2258 = vunpack.c.h.b16 %v2085
    %v2259 = vunpack.c.l.b16 %v2086
    %v2260 = vunpack.c.h.b16 %v2086
    %v2261 = vunpack.c.l.b16 %v2087
    %v2262 = vunpack.c.h.b16 %v2087
    %v2263 = vunpack.c.l.b16 %v2088
    %v2264 = vunpack.c.h.b16 %v2088
    %v2265 = vunpack.c.l.b16 %v2089
    %v2266 = vunpack.c.h.b16 %v2089
    %v2267 = vunpack.c.l.b16 %v2090
    %v2268 = vunpack.c.h.b16 %v2090
    %v2269 = vunpack.c.l.b16 %v2091
    %v2270 = vunpack.c.h.b16 %v2091
    %v2271 = vunpack.c.l.b16 %v2092
    %v2272 = vunpack.c.h.b16 %v2092
    %v2273 = vunpack.c.l.b16 %v2093
    %v2274 = vunpack.c.h.b16 %v2093
    %v2275 = vunpack.c.l.b16 %v2094
    %v2276 = vunpack.c.h.b16 %v2094
    %v2277 = vunpack.c.l.b16 %v2095
    %v2278 = vunpack.c.h.b16 %v2095
    %v2279 = vunpack.c.l.b16 %v2096
    %v2280 = vunpack.c.h.b16 %v2096
    %v2281 = vunpack.c.l.b16 %v2097
    %v2282 = vunpack.c.h.b16 %v2097
    %v2283 = vunpack.c.l.b16 %v2098
    %v2284 = vunpack.c.h.b16 %v2098
    %v2285 = vunpack.c.l.b16 %v2099
    %v2286 = vunpack.c.h.b16 %v2099
    %v2287 = vunpack.c.l.b16 %v2100
    %v2288 = vunpack.c.h.b16 %v2100
    %v2289 = vunpack.c.l.b16 %v2101
    %v2290 = vunpack.c.h.b16 %v2101
    %v2291 = vunpack.c.l.b16 %v2102
    %v2292 = vunpack.c.h.b16 %v2102
    %v2293 = vunpack.c.l.b16 %v2103
    %v2294 = vunpack.c.h.b16 %v2103
    %v2295 = vunpack.c.l.b16 %v2104
    %v2296 = vunpack.c.h.b16 %v2104
    %v2297 = vunpack.c.l.b16 %v2105
    %v2298 = vunpack.c.h.b16 %v2105
    %v2299 = vunpack.c.l.b16 %v2106
    %v2300 = vunpack.c.h.b16 %v2106
    %v2301 = vunpack.c.l.b16 %v2107
    %v2302 = vunpack.c.h.b16 %v2107
    %v2303 = vunpack.c.l.b16 %v2108
    %v2304 = vunpack.c.h.b16 %v2108
    %v2305 = vunpack.c.l.b16 %v2109
    %v2306 = vunpack.c.h.b16 %v2109
    %v2307 = vunpack.c.l.b16 %v2110
    %v2308 = vunpack.c.h.b16 %v2110
    %v2309 = vunpack.c.l.b16 %v2111
    %v2310 = vunpack.c.h.b16 %v2111
    %v2311 = vunpack.c.l.b16 %v2112
    %v2312 = vunpack.c.h.b16 %v2112
    %v2313 = vunpack.c.l.b16 %v2113
    %v2314 = vunpack.c.h.b16 %v2113
    %v2315 = vunpack.c.l.b16 %v2114
    %v2316 = vunpack.c.h.b16 %v2114
    %v2317 = vunpack.c.l.b16 %v2115
    %v2318 = vunpack.c.h.b16 %v2115
    %v2319 = vunpack.c.l.b16 %v2116
    %v2320 = vunpack.c.h.b16 %v2116
    %v2321 = vpack.c.b16 %v2195, %v2193
    %v2322 = vpack.c.b16 %v2196, %v2194
    %v2323 = vpack.c.b16 %v2199, %v2197
    %v2324 = vpack.c.b16 %v2200, %v2198
    %v2325 = vpack.c.b16 %v2203, %v2201
    %v2326 = vpack.c.b16 %v2204, %v2202
    %v2327 = vpack.c.b16 %v2207, %v2205
    %v2328 = vpack.c.b16 %v2208, %v2206
    %v2329 = vpack.c.b16 %v2211, %v2209
    %v2330 = vpack.c.b16 %v2212, %v2210
    %v2331 = vpack.c.b16 %v2215, %v2213
    %v2332 = vpack.c.b16 %v2216, %v2214
    %v2333 = vpack.c.b16 %v2219, %v2217
    %v2334 = vpack.c.b16 %v2220, %v2218
    %v2335 = vpack.c.b16 %v2223, %v2221
    %v2336 = vpack.c.b16 %v2224, %v2222
    %v2337 = vpack.c.b16 %v2227, %v2225
    %v2338 = vpack.c.b16 %v2228, %v2226
    %v2339 = vpack.c.b16 %v2231, %v2229
    %v2340 = vpack.c.b16 %v2232, %v2230
    %v2341 = vpack.c.b16 %v2235, %v2233
    %v2342 = vpack.c.b16 %v2236, %v2234
    %v2343 = vpack.c.b16 %v2239, %v2237
    %v2344 = vpack.c.b16 %v2240, %v2238
    %v2345 = vpack.c.b16 %v2243, %v2241
    %v2346 = vpack.c.b16 %v2244, %v2242
    %v2347 = vpack.c.b16 %v2247, %v2245
    %v2348 = vpack.c.b16 %v2248, %v2246
    %v2349 = vpack.c.b16 %v2251, %v2249
    %v2350 = vpack.c.b16 %v2252, %v2250
    %v2351 = vpack.c.b16 %v2255, %v2253
    %v2352 = vpack.c.b16 %v2256, %v2254
    %v2353 = vpack.c.b16 %v2259, %v2257
    %v2354 = vpack.c.b16 %v2260, %v2258
    %v2355 = vpack.c.b16 %v2263, %v2261
    %v2356 = vpack.c.b16 %v2264, %v2262
    %v2357 = vpack.c.b16 %v2267, %v2265
    %v2358 = vpack.c.b16 %v2268, %v2266
    %v2359 = vpack.c.b16 %v2271, %v2269
    %v2360 = vpack.c.b16 %v2272, %v2270
    %v2361 = vpack.c.b16 %v2275, %v2273
    %v2362 = vpack.c.b16 %v2276, %v2274
    %v2363 = vpack.c.b16 %v2279, %v2277
    %v2364 = vpack.c.b16 %v2280, %v2278
    %v2365 = vpack.c.b16 %v2283, %v2281
    %v2366 = vpack.c.b16 %v2284, %v2282
    %v2367 = vpack.c.b16 %v2287, %v2285
    %v2368 = vpack.c.b16 %v2288, %v2286
    %v2369 = vpack.c.b16 %v2291, %v2289
    %v2370 = vpack.c.b16 %v2292, %v2290
    %v2371 = vpack.c.b16 %v2295, %v2293
    %v2372 = vpack.c.b16 %v2296, %v2294
    %v2373 = vpack.c.b16 %v2299, %v2297
    %v2374 = vpack.c.b16 %v2300, %v2298
    %v2375 = vpack.c.b16 %v2303, %v2301
    %v2376 = vpack.c.b16 %v2304, %v2302
    %v2377 = vpack.c.b16 %v2307, %v2305
    %v2378 = vpack.c.b16 %v2308, %v2306
    %v2379 = vpack.c.b16 %v2311, %v2309
    %v2380 = vpack.c.b16 %v2312, %v2310
    %v2381 = vpack.c.b16 %v2315, %v2313
    %v2382 = vpack.c.b16 %v2316, %v2314
    %v2383 = vpack.c.b16 %v2319, %v2317
    %v2384 = vpack.c.b16 %v2320, %v2318
    %2449 = vmatprep.subr.bf16.mxu0 %v2336
    %2450 = vmatpush1.bf16.msra.mxu0 %v2335
    %2451 = vmatprep.subr.bf16.mxu0 %v2334
    %2452 = vmatpush1.bf16.msra.mxu0 %v2333
    %2453 = vmatprep.subr.bf16.mxu0 %v2332
    %2454 = vmatpush1.bf16.msra.mxu0 %v2331
    %2455 = vmatprep.subr.bf16.mxu0 %v2330
    %2456 = vmatpush1.bf16.msra.mxu0 %v2329
    %2457 = vmatprep.subr.bf16.mxu0 %v2328
    %2458 = vmatpush1.bf16.msra.mxu0 %v2327
    %2459 = vmatprep.subr.bf16.mxu0 %v2326
    %2460 = vmatpush1.bf16.msra.mxu0 %v2325
    %2461 = vmatprep.subr.bf16.mxu0 %v2324
    %2462 = vmatpush1.bf16.msra.mxu0 %v2323
    %2463 = vmatprep.subr.bf16.mxu0 %v2322
    %2464 = vmatpush1.bf16.msra.mxu0 %v2321
    %2465 = vmatprep.subr.bf16.mxu0 %v2352
    %2466 = vmatpush2.bf16.msra.mxu0 %v2351
    %2467 = vmatprep.subr.bf16.mxu0 %v2350
    %2468 = vmatpush2.bf16.msra.mxu0 %v2349
    %2469 = vmatprep.subr.bf16.mxu0 %v2348
    %2470 = vmatpush2.bf16.msra.mxu0 %v2347
    %2471 = vmatprep.subr.bf16.mxu0 %v2346
    %2472 = vmatpush2.bf16.msra.mxu0 %v2345
    %2473 = vmatprep.subr.bf16.mxu0 %v2344
    %2474 = vmatpush2.bf16.msra.mxu0 %v2343
    %2475 = vmatprep.subr.bf16.mxu0 %v2342
    %2476 = vmatpush2.bf16.msra.mxu0 %v2341
    %2477 = vmatprep.subr.bf16.mxu0 %v2340
    %2478 = vmatpush2.bf16.msra.mxu0 %v2339
    %2479 = vmatprep.subr.bf16.mxu0 %v2338
    %2480 = vmatpush2.bf16.msra.mxu0 %v2337
    %2481 = vmatprep.mubr.bf16.mxu0 %v2050
    %2482 = vmatmul.mubr.bf16.gmra.mxu0 %v2049
    %v2483 = vpop.f32.mrf.mxu0
    %v2484 = vadd.f32 %v2122, %v2483
    %v2485 = vpop.f32.mrf.mxu0
    %v2486 = vadd.f32 %v2126, %v2485
    %v2487 = vpop.f32.mrf.mxu0
    %v2488 = vpop.f32.mrf.mxu0
    %2489 = vdwg.mxu0
    %2490 = vmatprep.subr.bf16.mxu0 %v2368
    %2491 = vmatpush1.bf16.msra.mxu0 %v2367
    %2492 = vmatprep.subr.bf16.mxu0 %v2366
    %2493 = vmatpush1.bf16.msra.mxu0 %v2365
    %2494 = vmatprep.subr.bf16.mxu0 %v2364
    %2495 = vmatpush1.bf16.msra.mxu0 %v2363
    %2496 = vmatprep.subr.bf16.mxu0 %v2362
    %2497 = vmatpush1.bf16.msra.mxu0 %v2361
    %2498 = vmatprep.subr.bf16.mxu0 %v2360
    %2499 = vmatpush1.bf16.msra.mxu0 %v2359
    %2500 = vmatprep.subr.bf16.mxu0 %v2358
    %2501 = vmatpush1.bf16.msra.mxu0 %v2357
    %2502 = vmatprep.subr.bf16.mxu0 %v2356
    %2503 = vmatpush1.bf16.msra.mxu0 %v2355
    %2504 = vmatprep.subr.bf16.mxu0 %v2354
    %2505 = vmatpush1.bf16.msra.mxu0 %v2353
    %2506 = vmatprep.subr.bf16.mxu0 %v2384
    %2507 = vmatpush2.bf16.msra.mxu0 %v2383
    %2508 = vmatprep.subr.bf16.mxu0 %v2382
    %2509 = vmatpush2.bf16.msra.mxu0 %v2381
    %2510 = vmatprep.subr.bf16.mxu0 %v2380
    %2511 = vmatpush2.bf16.msra.mxu0 %v2379
    %2512 = vmatprep.subr.bf16.mxu0 %v2378
    %2513 = vmatpush2.bf16.msra.mxu0 %v2377
    %2514 = vmatprep.subr.bf16.mxu0 %v2376
    %2515 = vmatpush2.bf16.msra.mxu0 %v2375
    %2516 = vmatprep.subr.bf16.mxu0 %v2374
    %2517 = vmatpush2.bf16.msra.mxu0 %v2373
    %2518 = vmatprep.subr.bf16.mxu0 %v2372
    %2519 = vmatpush2.bf16.msra.mxu0 %v2371
    %2520 = vmatprep.subr.bf16.mxu0 %v2370
    %2521 = vmatpush2.bf16.msra.mxu0 %v2369
    %2522 = vmatprep.mubr.bf16.mxu0 %v2052
    %2523 = vmatmul.mubr.bf16.gmra.mxu0 %v2051
    %v2524 = vpop.f32.mrf.mxu0
    %v2525 = vadd.f32 %v2484, %v2524
    %v2526 = vpop.f32.mrf.mxu0
    %v2527 = vadd.f32 %v2486, %v2526
    %v2528 = vpop.f32.mrf.mxu0
    %v2529 = vpop.f32.mrf.mxu0
    %2530 = vdwg.mxu0
    %vm2531 = vcmp.gt.f32.partialorder %v2525, 0.0
    %vm2532 = vcmp.gt.f32.partialorder %v2527, 0.0
    %v2533 = vmul.f32 %v2525, 0.2
    %v2534 = vmul.f32 %v2527, 0.2
    %v2535 = vsel %vm2531, %v2525, %v2533
    %v2536 = vsel %vm2532, %v2527, %v2534
    %v2537 = vpack.c.bf16 %v2535, %v2535
    %v2538 = vpack.c.bf16 %v2536, %v2536
    %v2539 = vld [vmem:[#allocation10] sm:$0xf]
    %v2540 = vld [vmem:[#allocation10 + $0x4] sm:$0xf]
    %v2541 = vld [vmem:[#allocation10 + $0x8] sm:$0xf]
    %v2542 = vld [vmem:[#allocation10 + $0xc] sm:$0xf]
    %v2543 = vld [vmem:[#allocation10 + $0x10] sm:$0xf]
    %v2544 = vld [vmem:[#allocation10 + $0x14] sm:$0xf]
    %v2545 = vld [vmem:[#allocation10 + $0x18] sm:$0xf]
    %v2546 = vld [vmem:[#allocation10 + $0x1c] sm:$0xf]
    %v2547 = vld [vmem:[#allocation10 + $0x20] sm:$0xf]
    %v2548 = vld [vmem:[#allocation10 + $0x24] sm:$0xf]
    %v2549 = vld [vmem:[#allocation10 + $0x28] sm:$0xf]
    %v2550 = vld [vmem:[#allocation10 + $0x2c] sm:$0xf]
    %v2551 = vld [vmem:[#allocation10 + $0x30] sm:$0xf]
    %v2552 = vld [vmem:[#allocation10 + $0x34] sm:$0xf]
    %v2553 = vld [vmem:[#allocation10 + $0x38] sm:$0xf]
    %v2554 = vld [vmem:[#allocation10 + $0x3c] sm:$0xf]
    %v2555 = vld [vmem:[#allocation10 + $0x40] sm:$0xf]
    %v2556 = vld [vmem:[#allocation10 + $0x44] sm:$0xf]
    %v2557 = vld [vmem:[#allocation10 + $0x48] sm:$0xf]
    %v2558 = vld [vmem:[#allocation10 + $0x4c] sm:$0xf]
    %v2559 = vld [vmem:[#allocation10 + $0x50] sm:$0xf]
    %v2560 = vld [vmem:[#allocation10 + $0x54] sm:$0xf]
    %v2561 = vld [vmem:[#allocation10 + $0x58] sm:$0xf]
    %v2562 = vld [vmem:[#allocation10 + $0x5c] sm:$0xf]
    %v2563 = vld [vmem:[#allocation10 + $0x60] sm:$0xf]
    %v2564 = vld [vmem:[#allocation10 + $0x64] sm:$0xf]
    %v2565 = vld [vmem:[#allocation10 + $0x68] sm:$0xf]
    %v2566 = vld [vmem:[#allocation10 + $0x6c] sm:$0xf]
    %v2567 = vld [vmem:[#allocation10 + $0x70] sm:$0xf]
    %v2568 = vld [vmem:[#allocation10 + $0x74] sm:$0xf]
    %v2569 = vld [vmem:[#allocation10 + $0x78] sm:$0xf]
    %v2570 = vld [vmem:[#allocation10 + $0x7c] sm:$0xf]
    %v2571 = vld [vmem:[%s6] sm:$0x1]
    %v2573 = vlaneseq
    %v2574 = vshrl.u32 %v2573, 7
    %v2575 = vsub.s32 0, %v2574
    %v2576 = vrot.slane %v2571, %v2575
    %v2610 = vunpack.c.l.b16 %v2539
    %v2611 = vunpack.c.l.b16 %v2540
    %v2612 = vunpack.c.l.b16 %v2541
    %v2613 = vunpack.c.l.b16 %v2542
    %v2614 = vunpack.c.l.b16 %v2543
    %v2615 = vunpack.c.l.b16 %v2544
    %v2616 = vunpack.c.l.b16 %v2545
    %v2617 = vunpack.c.l.b16 %v2546
    %v2618 = vunpack.c.l.b16 %v2547
    %v2619 = vunpack.c.l.b16 %v2548
    %v2620 = vunpack.c.l.b16 %v2549
    %v2621 = vunpack.c.l.b16 %v2550
    %v2622 = vunpack.c.l.b16 %v2551
    %v2623 = vunpack.c.l.b16 %v2552
    %v2624 = vunpack.c.l.b16 %v2553
    %v2625 = vunpack.c.l.b16 %v2554
    %v2626 = vunpack.c.l.b16 %v2555
    %v2627 = vunpack.c.l.b16 %v2556
    %v2628 = vunpack.c.l.b16 %v2557
    %v2629 = vunpack.c.l.b16 %v2558
    %v2630 = vunpack.c.l.b16 %v2559
    %v2631 = vunpack.c.l.b16 %v2560
    %v2632 = vunpack.c.l.b16 %v2561
    %v2633 = vunpack.c.l.b16 %v2562
    %v2634 = vunpack.c.l.b16 %v2563
    %v2635 = vunpack.c.l.b16 %v2564
    %v2636 = vunpack.c.l.b16 %v2565
    %v2637 = vunpack.c.l.b16 %v2566
    %v2638 = vunpack.c.l.b16 %v2567
    %v2639 = vunpack.c.l.b16 %v2568
    %v2640 = vunpack.c.l.b16 %v2569
    %v2641 = vunpack.c.l.b16 %v2570
    %v2642 = vpack.c.b16 %v2611, %v2610
    %v2643 = vpack.c.b16 %v2613, %v2612
    %v2644 = vpack.c.b16 %v2615, %v2614
    %v2645 = vpack.c.b16 %v2617, %v2616
    %v2646 = vpack.c.b16 %v2619, %v2618
    %v2647 = vpack.c.b16 %v2621, %v2620
    %v2648 = vpack.c.b16 %v2623, %v2622
    %v2649 = vpack.c.b16 %v2625, %v2624
    %v2650 = vpack.c.b16 %v2627, %v2626
    %v2651 = vpack.c.b16 %v2629, %v2628
    %v2652 = vpack.c.b16 %v2631, %v2630
    %v2653 = vpack.c.b16 %v2633, %v2632
    %v2654 = vpack.c.b16 %v2635, %v2634
    %v2655 = vpack.c.b16 %v2637, %v2636
    %v2656 = vpack.c.b16 %v2639, %v2638
    %v2657 = vpack.c.b16 %v2641, %v2640
    %2674 = vmatprep.subr.bf16.mxu0 0
    %2675 = vmatpush1.bf16.msra.mxu0 %v2649
    %2676 = vmatprep.subr.bf16.mxu0 0
    %2677 = vmatpush1.bf16.msra.mxu0 %v2648
    %2678 = vmatprep.subr.bf16.mxu0 0
    %2679 = vmatpush1.bf16.msra.mxu0 %v2647
    %2680 = vmatprep.subr.bf16.mxu0 0
    %2681 = vmatpush1.bf16.msra.mxu0 %v2646
    %2682 = vmatprep.subr.bf16.mxu0 0
    %2683 = vmatpush1.bf16.msra.mxu0 %v2645
    %2684 = vmatprep.subr.bf16.mxu0 0
    %2685 = vmatpush1.bf16.msra.mxu0 %v2644
    %2686 = vmatprep.subr.bf16.mxu0 0
    %2687 = vmatpush1.bf16.msra.mxu0 %v2643
    %2688 = vmatprep.subr.bf16.mxu0 0
    %2689 = vmatpush1.bf16.msra.mxu0 %v2642
    %2690 = vmatprep.subr.bf16.mxu0 0
    %2691 = vmatpush2.bf16.msra.mxu0 %v2657
    %2692 = vmatprep.subr.bf16.mxu0 0
    %2693 = vmatpush2.bf16.msra.mxu0 %v2656
    %2694 = vmatprep.subr.bf16.mxu0 0
    %2695 = vmatpush2.bf16.msra.mxu0 %v2655
    %2696 = vmatprep.subr.bf16.mxu0 0
    %2697 = vmatpush2.bf16.msra.mxu0 %v2654
    %2698 = vmatprep.subr.bf16.mxu0 0
    %2699 = vmatpush2.bf16.msra.mxu0 %v2653
    %2700 = vmatprep.subr.bf16.mxu0 0
    %2701 = vmatpush2.bf16.msra.mxu0 %v2652
    %2702 = vmatprep.subr.bf16.mxu0 0
    %2703 = vmatpush2.bf16.msra.mxu0 %v2651
    %2704 = vmatprep.subr.bf16.mxu0 0
    %2705 = vmatpush2.bf16.msra.mxu0 %v2650
    %2706 = vmatprep.mubr.bf16.mxu0 %v2538
    %2707 = vmatmul.mubr.bf16.gmra.mxu0 %v2537
    %v2708 = vpop.f32.mrf.mxu0
    %v2709 = vadd.f32 %v2576, %v2708
    %v2710 = vpop.f32.mrf.mxu0
    %v2711 = vpop.f32.mrf.mxu0
    %v2712 = vpop.f32.mrf.mxu0
    %2713 = vdwg.mxu0
    %v2714 = vxor.u32 %v2709, 2147483648
    %v2715 = vmul.f32 %v2714, 1.442695
    %v2716 = vpow.pop %v2715
    %v2717 = vadd.f32 %v2716, 1.0
    %v2718 = vrcp.pop %v2717
    %v2719 = vmul.f32 1.0, %v2718
    %2720 = vst [vmem:[#allocation11] sm:$0x3] %v2719
    // Predicated region
    $region50: #{tpu_custom_call.1} parent=1 // pred_check
      _
    $region51: #{tpu_custom_call.1} parent=1 // pred_check_branch
      %2722 = sbr.rel (0) target = $region53
    $region52: #{tpu_custom_call.1} parent=1 // pred_region
      %s2724 = ssub.s32 32, 32
      %2725 = vsyncadd [#allocation4], %s2724
      %s2727 = sshll.u32 [#allocation11], 4
      %s2728 = int_to_ptr.vmem [resolvable:$true] %s2727
      %2730 = dma.vmem_to_hbm [thread:$0]  %s2728, 32, %s7, [#allocation4]
    $region53: #{tpu_custom_call.1} parent=1 // pred_fallthru
      _
    // Predicated region
    $region54: #{tpu_custom_call.1} parent=1 // pred_check
      _
    $region55: #{tpu_custom_call.1} parent=1 // pred_check_branch
      %2732 = sbr.rel (0) target = $region57
    $region56: #{tpu_custom_call.1} parent=1 // pred_region
      %2733 = dma.done [#allocation4], 32
    $region57: #{tpu_custom_call.1} parent=1 // pred_fallthru
      _
    %2734 = vsyncpa [#allocation3], 1
    %2735 = vsyncpa [#allocation6], 1
    %2736 = vsyncpa [#allocation9], 1
    %2737 = vsyncpa [#allocation4], 1

</llo_original>
